<compile_context>
chip_gen: v7x
topology: tpu7x:2x2x1
jax: 0.10.0
libtpu: 0.0.40
codegen_flags: <defaults>
</compile_context>

<pallas_src>
import jax
import jax.numpy as jnp
from jax.experimental import pallas as pl
from jax.experimental.pallas import tpu as pltpu


def _round_up(n, m):
    return ((n + m - 1) // m) * m


def _make_deep_esn_kernel(num_layers: int, hidden_pad: int, time_block: int,
                          unroll: int, compute_dtype):
    """Build the Pallas kernel body.

    Kernel refs (in order):
      x_ref                 (TB, I)        -- time chunk of inputs
      w0_in_ref             (I,  HP)       -- layer-0 input weights, transposed
      w0_hh_ref             (HP, HP)       -- layer-0 recurrent weights, transposed
      w_cat_refs[0..L-2]    (2*HP, HP)     -- [W_ih_l^T ; W_hh_l^T] for l >= 1
      out_ref               (TB, L*HP)
      u0_ref  (scratch)     (TB, HP)       -- hoisted layer-0 projection
      h_ref   (scratch)     (1, L*HP)      -- persistent hidden states (f32)
    """
    L, HP, TB = num_layers, hidden_pad, time_block

    def kernel(*refs):
        x_ref = refs[0]
        w0_in_ref = refs[1]
        w0_hh_ref = refs[2]
        w_cat_refs = refs[3:3 + (L - 1)]
        out_ref = refs[3 + (L - 1)]
        u0_ref = refs[4 + (L - 1)]
        h_ref = refs[5 + (L - 1)]

        c = pl.program_id(0)

        # Fresh (zero) hidden state at the start of the sequence
        # (matches hx=None -> zeros in ESNCell.forward on the first call).
        @pl.when(c == 0)
        def _init():
            h_ref[...] = jnp.zeros_like(h_ref)

        # Hoisted layer-0 input projection for the whole time chunk:
        # one real MXU-shaped (TB x I x HP) matmul instead of TB matvecs.
        u0_ref[...] = jnp.dot(x_ref[...].astype(compute_dtype),
                              w0_in_ref[...],
                              preferred_element_type=jnp.float32)

        def step(t, carry):
            # Layer 0: recurrent part only (input part precomputed in u0).
            pre0 = u0_ref[pl.ds(t, 1), :] + jnp.dot(
                h_ref[:, 0:HP].astype(compute_dtype), w0_hh_ref[...],
                preferred_element_type=jnp.float32)
            h_ref[:, 0:HP] = jnp.tanh(pre0)

            # Deeper layers: fused [h_{l-1}(t), h_l(t-1)] @ [W_ih^T ; W_hh^T].
            # The LHS is a contiguous lane slice of the state buffer because
            # layer l-1 was just updated in place while layer l still holds
            # its t-1 value.
            for l in range(1, L):
                lhs = h_ref[:, (l - 1) * HP:(l + 1) * HP]
                pre = jnp.dot(lhs.astype(compute_dtype),
                              w_cat_refs[l - 1][...],
                              preferred_element_type=jnp.float32)
                h_ref[:, l * HP:(l + 1) * HP] = jnp.tanh(pre)

            # Single wide row store per timestep (off the recurrence chain).
            out_ref[pl.ds(t, 1), :] = h_ref[...]
            return carry

        jax.lax.fori_loop(0, TB, step, 0, unroll=unroll)

    return kernel


def deep_esn_forward(x, w_ih_list, w_hh_list, include_input=False,
                     time_block=128, weight_dtype=jnp.float32):
    """Pallas implementation of DeepESNCell.forward.

    Args:
      x: (T, 1, input_size) float sequence (batch = 1, matching the PyTorch
         usage where result[i, :] = cat(hidden_states, axis=1) requires B==1).
      w_ih_list: per-layer input weights; layer 0: (H, input_size),
                 layers > 0: (H, H)  (PyTorch nn.Linear-style layout).
      w_hh_list: per-layer recurrent weights, each (H, H).
      include_input: if True, append the flattened input columns (glue copy).
      time_block: timesteps processed per grid step (rounded to multiple of 8).
      weight_dtype: jnp.float32 or jnp.bfloat16 (bf16 halves weight VMEM/DMA;
                    hidden state and accumulation stay f32).

    Returns:
      (T, num_layers*H [+ input_size]) float32 array.
    """
    T, B, I = x.shape
    assert B == 1, "DeepESNCell result assignment requires batch size 1"
    L = len(w_ih_list)
    H = int(w_hh_list[0].shape[0])
    HP = _round_up(max(H, 1), 128)          # lane-dense hidden width
    out_width = L * HP

    wd = jnp.dtype(weight_dtype)
    compute_dtype = jnp.bfloat16 if wd == jnp.bfloat16 else jnp.float32

    # --- Weight preparation (glue): transpose, zero-pad, stack, cast. -------
    # Zero-padded cols keep padded hidden lanes exactly 0 through tanh.
    w0 = jnp.asarray(w_ih_list[0], jnp.float32).T                    # (I, H)
    w0_in = jnp.zeros((I, HP), jnp.float32).at[:, :H].set(w0).astype(wd)
    wr0 = jnp.asarray(w_hh_list[0], jnp.float32).T                   # (H, H)
    w0_hh = jnp.zeros((HP, HP), jnp.float32).at[:H, :H].set(wr0).astype(wd)
    w_cat = []
    for l in range(1, L):
        wi = jnp.asarray(w_ih_list[l], jnp.float32).T                # (H, H)
        wh = jnp.asarray(w_hh_list[l], jnp.float32).T                # (H, H)
        wc = jnp.zeros((2 * HP, HP), jnp.float32)
        wc = wc.at[:H, :H].set(wi)            # rows hit by h_{l-1}(t)
        wc = wc.at[HP:HP + H, :H].set(wh)     # rows hit by h_l(t-1)
        w_cat.append(wc.astype(wd))
    weight_args = [w0_in, w0_hh] + w_cat
    wbytes = sum(int(w.size) * int(w.dtype.itemsize) for w in weight_args)

    # --- Time-block selection under a generation-aware VMEM budget. ---------
    TB = int(min(_round_up(T, 8), _round_up(max(int(time_block), 8), 8)))

    def vmem_estimate(tb):
        return (2 * tb * I * 4                # input chunk, double-buffered
                + 2 * wbytes                  # weights (default double-buffer)
                + 2 * tb * out_width * 4      # output chunk, double-buffered
                + tb * HP * 4                 # u0 scratch
                + out_width * 4)              # hidden-state scratch

    try:
        cap = int(getattr(pltpu.get_tpu_info(), "vmem_capacity_bytes",
                          64 << 20))
    except Exception:
        cap = 64 << 20                        # conservative (v7x per-core)
    budget = int(cap * 0.85)                  # leave compiler headroom
    while vmem_estimate(TB) > budget and TB > 8:
        TB = max(8, _round_up(TB // 2, 8))
    vmem_limit = int(min(max(int(vmem_estimate(TB) * 1.25) + (4 << 20),
                             16 << 20), budget))

    T_pad = _round_up(T, TB)
    x2 = jnp.asarray(x, jnp.float32).reshape(T, I)
    if T_pad > T:
        x2 = jnp.pad(x2, ((0, T_pad - T), (0, 0)))   # trailing rows discarded

    unroll = int(min(TB, 16))
    kernel = _make_deep_esn_kernel(L, HP, TB, unroll, compute_dtype)

    in_specs = [pl.BlockSpec((TB, I), lambda c: (c, 0))]
    for w in weight_args:
        # Constant index_map -> the pipeline DMAs each weight only once.
        in_specs.append(pl.BlockSpec(tuple(w.shape), lambda c: (0, 0)))

    out = pl.pallas_call(
        kernel,
        out_shape=jax.ShapeDtypeStruct((T_pad, out_width), jnp.float32),
        grid=(T_pad // TB,),
        in_specs=in_specs,
        out_specs=pl.BlockSpec((TB, out_width), lambda c: (c, 0)),
        scratch_shapes=[pltpu.VMEM((TB, HP), jnp.float32),       # u0
                        pltpu.VMEM((1, out_width), jnp.float32)],  # h state
        compiler_params=pltpu.CompilerParams(
            dimension_semantics=("arbitrary",),   # time recurrence is serial
            vmem_limit_bytes=vmem_limit),
    )(x2, *weight_args)

    if H == HP:
        # Fast path: lane-aligned hidden width, no slice/concat round-trip.
        result = out[:T]
    else:
        result = jnp.concatenate(
            [out[:T, l * HP:l * HP + H] for l in range(L)], axis=1)
    if include_input:
        result = jnp.concatenate(
            [result, jnp.asarray(x, jnp.float32).reshape(T, -1)], axis=1)
    return result


def deep_esn_reference(x, w_ih_list, w_hh_list, include_input=False):
    """Pure-JAX reference mirroring the PyTorch forward loop."""
    T = x.shape[0]
    L = len(w_ih_list)
    H = w_hh_list[0].shape[0]
    hs = [jnp.zeros((1, H), jnp.float32) for _ in range(L)]
    rows = []
    for t in range(T):
        cell_in = x[t].astype(jnp.float32)                    # (1, I)
        per_layer = []
        for l in range(L):
            h = jnp.tanh(cell_in @ w_ih_list[l].T + hs[l] @ w_hh_list[l].T)
            hs[l] = h
            cell_in = h
            per_layer.append(h)
        rows.append(jnp.concatenate(per_layer, axis=1))
    res = jnp.concatenate(rows, axis=0)
    if include_input:
        res = jnp.concatenate([res, x.reshape(T, -1).astype(jnp.float32)],
                              axis=1)
    return res


if __name__ == "__main__":
    # Small deterministic setup: seq=8, batch=1, input_size=4,
    # hidden_size=32, num_layers=2, bias=False (DeepESNCell default).
    T, I, H, L = 8, 4, 32, 2

    key = jax.random.PRNGKey(0)
    k_x, k_ih0, k_hh0, k_ih1, k_hh1, k_x2 = jax.random.split(key, 6)

    x = jax.random.uniform(k_x, (T, 1, I), jnp.float32, -1.0, 1.0)

    # Deterministic synthetic weights (scaled uniform, ESN-style).
    w_ih = [
        jax.random.uniform(k_ih0, (H, I), jnp.float32, -1.0, 1.0),
        jax.random.uniform(k_ih1, (H, H), jnp.float32, -1.0, 1.0),
    ]
    w_hh = [
        0.25 * jax.random.uniform(k_hh0, (H, H), jnp.float32, -1.0, 1.0),
        0.25 * jax.random.uniform(k_hh1, (H, H), jnp.float32, -1.0, 1.0),
    ]

    ref = deep_esn_reference(x, w_ih, w_hh, include_input=False)

    # f32 weights, single time chunk.
    out = jax.block_until_ready(deep_esn_forward(x, w_ih, w_hh))
    assert out.shape == (T, L * H), out.shape
    assert jnp.allclose(out, ref, atol=5e-5, rtol=5e-5), (
        float(jnp.max(jnp.abs(out - ref))))

    # include_input variant (appends the flattened input columns).
    out_i = jax.block_until_ready(
        deep_esn_forward(x, w_ih, w_hh, include_input=True))
    ref_i = deep_esn_reference(x, w_ih, w_hh, include_input=True)
    assert out_i.shape == (T, L * H + I), out_i.shape
    assert jnp.allclose(out_i, ref_i, atol=5e-5, rtol=5e-5), (
        float(jnp.max(jnp.abs(out_i - ref_i))))

    # Multi-chunk run (hidden state carried across grid steps).
    T2 = 24
    x_long = jax.random.uniform(k_x2, (T2, 1, I), jnp.float32, -1.0, 1.0)
    out_c = jax.block_until_ready(
        deep_esn_forward(x_long, w_ih, w_hh, time_block=8))
    ref_c = deep_esn_reference(x_long, w_ih, w_hh)
    assert out_c.shape == (T2, L * H), out_c.shape
    assert jnp.allclose(out_c, ref_c, atol=5e-5, rtol=5e-5), (
        float(jnp.max(jnp.abs(out_c - ref_c))))

    # bf16 weights (f32 hidden state / accumulation): looser tolerance.
    out_b = jax.block_until_ready(
        deep_esn_forward(x, w_ih, w_hh, weight_dtype=jnp.bfloat16))
    assert out_b.shape == (T, L * H), out_b.shape
    assert jnp.allclose(out_b, ref, atol=1e-1, rtol=1e-1), (
        float(jnp.max(jnp.abs(out_b - ref))))

    print("KERNEL_OK")
</pallas_src>

<mosaic_0001>
module attributes {stable_mosaic.version = 11 : i64} {
  func.func @kernel(%arg0: i32, %arg1: memref<8x4xf32, #tpu.memory_space<vmem>>, %arg2: memref<4x128xf32, #tpu.memory_space<vmem>>, %arg3: memref<128x128xf32, #tpu.memory_space<vmem>>, %arg4: memref<256x128xf32, #tpu.memory_space<vmem>>, %arg5: memref<8x256xf32, #tpu.memory_space<vmem>>, %arg6: memref<8x128xf32, #tpu.memory_space<vmem>>, %arg7: memref<1x256xf32, #tpu.memory_space<vmem>>) attributes {dimension_semantics = [#tpu.dimension_semantics<arbitrary>], iteration_bounds = array<i64: 1>, scalar_prefetch = 0 : i64, scratch_operands = 2 : i64, tpu.core_type = #tpu.core_type<tc>, window_params = [{transform_indices = @transform_0, window_bounds = array<i64: 8, 4>}, {pipeline_mode = #tpu.pipeline_mode<synchronous>, transform_indices = @transform_1, window_bounds = array<i64: 4, 128>}, {pipeline_mode = #tpu.pipeline_mode<synchronous>, transform_indices = @transform_2, window_bounds = array<i64: 128, 128>}, {pipeline_mode = #tpu.pipeline_mode<synchronous>, transform_indices = @transform_3, window_bounds = array<i64: 256, 128>}, {transform_indices = @transform_4, window_bounds = array<i64: 8, 256>}]} {
    %c0_i32 = arith.constant 0 : i32
    %0 = arith.cmpi eq, %arg0, %c0_i32 : i32
    %1 = arith.extui %0 : i1 to i32
    %c0_i32_0 = arith.constant 0 : i32
    %2 = arith.cmpi ne, %1, %c0_i32_0 : i32
    scf.if %2 {
      %cst_150 = arith.constant 0.000000e+00 : f32
      %135 = vector.broadcast %cst_150 : f32 to vector<1x256xf32>
      %c0_151 = arith.constant 0 : index
      %c0_152 = arith.constant 0 : index
      %136 = vector.load %arg7[%c0_151, %c0_152] : memref<1x256xf32, #tpu.memory_space<vmem>>, vector<1x256xf32>
      tpu.vector_store %arg7[%c0_151, %c0_152], %135 {strides = array<i32>} : memref<1x256xf32, #tpu.memory_space<vmem>>, vector<1x256xf32>,
    } else {
    }
    %c0 = arith.constant 0 : index
    %c0_1 = arith.constant 0 : index
    %3 = vector.load %arg1[%c0, %c0_1] : memref<8x4xf32, #tpu.memory_space<vmem>>, vector<8x4xf32>
    %c0_2 = arith.constant 0 : index
    %c0_3 = arith.constant 0 : index
    %4 = vector.load %arg2[%c0_2, %c0_3] : memref<4x128xf32, #tpu.memory_space<vmem>>, vector<4x128xf32>
    %cst = arith.constant dense<0.000000e+00> : vector<8x128xf32>
    %5 = tpu.matmul %3, %4, %cst {dimension_numbers = #tpu.dot_dimension_numbers<[1], [0], [0], [1], [0, 0, 1, 1], [], []>} : vector<8x4xf32>, vector<4x128xf32>, vector<8x128xf32> -> vector<8x128xf32>
    %c0_4 = arith.constant 0 : index
    %c0_5 = arith.constant 0 : index
    %6 = vector.load %arg6[%c0_4, %c0_5] : memref<8x128xf32, #tpu.memory_space<vmem>>, vector<8x128xf32>
    tpu.vector_store %arg6[%c0_4, %c0_5], %5 {strides = array<i32>} : memref<8x128xf32, #tpu.memory_space<vmem>>, vector<8x128xf32>,
    %c0_i32_6 = arith.constant 0 : i32
    %7 = arith.index_cast %c0_i32_6 : i32 to index
    %c0_7 = arith.constant 0 : index
    %8 = vector.load %arg6[%7, %c0_7] : memref<8x128xf32, #tpu.memory_space<vmem>>, vector<1x128xf32>
    %c0_8 = arith.constant 0 : index
    %c0_9 = arith.constant 0 : index
    %9 = vector.load %arg7[%c0_8, %c0_9] : memref<1x256xf32, #tpu.memory_space<vmem>>, vector<1x128xf32>
    %c0_10 = arith.constant 0 : index
    %c0_11 = arith.constant 0 : index
    %10 = vector.load %arg3[%c0_10, %c0_11] : memref<128x128xf32, #tpu.memory_space<vmem>>, vector<128x128xf32>
    %cst_12 = arith.constant dense<0.000000e+00> : vector<1x128xf32>
    %11 = tpu.matmul %9, %10, %cst_12 {dimension_numbers = #tpu.dot_dimension_numbers<[1], [0], [0], [1], [0, 0, 1, 1], [], []>} : vector<1x128xf32>, vector<128x128xf32>, vector<1x128xf32> -> vector<1x128xf32>
    %12 = arith.addf %8, %11 : vector<1x128xf32>
    %13 = math.tanh %12 : vector<1x128xf32>
    %c0_13 = arith.constant 0 : index
    %c0_14 = arith.constant 0 : index
    %14 = vector.load %arg7[%c0_13, %c0_14] : memref<1x256xf32, #tpu.memory_space<vmem>>, vector<1x128xf32>
    tpu.vector_store %arg7[%c0_13, %c0_14], %13 {strides = array<i32>} : memref<1x256xf32, #tpu.memory_space<vmem>>, vector<1x128xf32>,
    %c0_15 = arith.constant 0 : index
    %c0_16 = arith.constant 0 : index
    %15 = vector.load %arg7[%c0_15, %c0_16] : memref<1x256xf32, #tpu.memory_space<vmem>>, vector<1x256xf32>
    %c0_17 = arith.constant 0 : index
    %c0_18 = arith.constant 0 : index
    %16 = vector.load %arg4[%c0_17, %c0_18] : memref<256x128xf32, #tpu.memory_space<vmem>>, vector<256x128xf32>
    %cst_19 = arith.constant dense<0.000000e+00> : vector<1x128xf32>
    %17 = tpu.matmul %15, %16, %cst_19 {dimension_numbers = #tpu.dot_dimension_numbers<[1], [0], [0], [1], [0, 0, 1, 1], [], []>} : vector<1x256xf32>, vector<256x128xf32>, vector<1x128xf32> -> vector<1x128xf32>
    %18 = math.tanh %17 : vector<1x128xf32>
    %c0_20 = arith.constant 0 : index
    %c128 = arith.constant 128 : index
    %19 = vector.load %arg7[%c0_20, %c128] : memref<1x256xf32, #tpu.memory_space<vmem>>, vector<1x128xf32>
    tpu.vector_store %arg7[%c0_20, %c128], %18 {strides = array<i32>} : memref<1x256xf32, #tpu.memory_space<vmem>>, vector<1x128xf32>,
    %c0_21 = arith.constant 0 : index
    %c0_22 = arith.constant 0 : index
    %20 = vector.load %arg7[%c0_21, %c0_22] : memref<1x256xf32, #tpu.memory_space<vmem>>, vector<1x256xf32>
    %21 = arith.index_cast %c0_i32_6 : i32 to index
    %c0_23 = arith.constant 0 : index
    %22 = vector.load %arg5[%21, %c0_23] : memref<8x256xf32, #tpu.memory_space<vmem>>, vector<1x256xf32>
    tpu.vector_store %arg5[%21, %c0_23], %20 {strides = array<i32>} : memref<8x256xf32, #tpu.memory_space<vmem>>, vector<1x256xf32>,
    %c1_i32 = arith.constant 1 : i32
    %23 = arith.index_cast %c1_i32 : i32 to index
    %c0_24 = arith.constant 0 : index
    %24 = vector.load %arg6[%23, %c0_24] : memref<8x128xf32, #tpu.memory_space<vmem>>, vector<1x128xf32>
    %c0_25 = arith.constant 0 : index
    %c0_26 = arith.constant 0 : index
    %25 = vector.load %arg7[%c0_25, %c0_26] : memref<1x256xf32, #tpu.memory_space<vmem>>, vector<1x128xf32>
    %c0_27 = arith.constant 0 : index
    %c0_28 = arith.constant 0 : index
    %26 = vector.load %arg3[%c0_27, %c0_28] : memref<128x128xf32, #tpu.memory_space<vmem>>, vector<128x128xf32>
    %cst_29 = arith.constant dense<0.000000e+00> : vector<1x128xf32>
    %27 = tpu.matmul %25, %26, %cst_29 {dimension_numbers = #tpu.dot_dimension_numbers<[1], [0], [0], [1], [0, 0, 1, 1], [], []>} : vector<1x128xf32>, vector<128x128xf32>, vector<1x128xf32> -> vector<1x128xf32>
    %28 = arith.addf %24, %27 : vector<1x128xf32>
    %29 = math.tanh %28 : vector<1x128xf32>
    %c0_30 = arith.constant 0 : index
    %c0_31 = arith.constant 0 : index
    %30 = vector.load %arg7[%c0_30, %c0_31] : memref<1x256xf32, #tpu.memory_space<vmem>>, vector<1x128xf32>
    tpu.vector_store %arg7[%c0_30, %c0_31], %29 {strides = array<i32>} : memref<1x256xf32, #tpu.memory_space<vmem>>, vector<1x128xf32>,
    %c0_32 = arith.constant 0 : index
    %c0_33 = arith.constant 0 : index
    %31 = vector.load %arg7[%c0_32, %c0_33] : memref<1x256xf32, #tpu.memory_space<vmem>>, vector<1x256xf32>
    %c0_34 = arith.constant 0 : index
    %c0_35 = arith.constant 0 : index
    %32 = vector.load %arg4[%c0_34, %c0_35] : memref<256x128xf32, #tpu.memory_space<vmem>>, vector<256x128xf32>
    %cst_36 = arith.constant dense<0.000000e+00> : vector<1x128xf32>
    %33 = tpu.matmul %31, %32, %cst_36 {dimension_numbers = #tpu.dot_dimension_numbers<[1], [0], [0], [1], [0, 0, 1, 1], [], []>} : vector<1x256xf32>, vector<256x128xf32>, vector<1x128xf32> -> vector<1x128xf32>
    %34 = math.tanh %33 : vector<1x128xf32>
    %c0_37 = arith.constant 0 : index
    %c128_38 = arith.constant 128 : index
    %35 = vector.load %arg7[%c0_37, %c128_38] : memref<1x256xf32, #tpu.memory_space<vmem>>, vector<1x128xf32>
    tpu.vector_store %arg7[%c0_37, %c128_38], %34 {strides = array<i32>} : memref<1x256xf32, #tpu.memory_space<vmem>>, vector<1x128xf32>,
    %c0_39 = arith.constant 0 : index
    %c0_40 = arith.constant 0 : index
    %36 = vector.load %arg7[%c0_39, %c0_40] : memref<1x256xf32, #tpu.memory_space<vmem>>, vector<1x256xf32>
    %37 = arith.index_cast %c1_i32 : i32 to index
    %c0_41 = arith.constant 0 : index
    %38 = vector.load %arg5[%37, %c0_41] : memref<8x256xf32, #tpu.memory_space<vmem>>, vector<1x256xf32>
    tpu.vector_store %arg5[%37, %c0_41], %36 {strides = array<i32>} : memref<8x256xf32, #tpu.memory_space<vmem>>, vector<1x256xf32>,
    %c2_i32 = arith.constant 2 : i32
    %39 = arith.index_cast %c2_i32 : i32 to index
    %c0_42 = arith.constant 0 : index
    %40 = vector.load %arg6[%39, %c0_42] : memref<8x128xf32, #tpu.memory_space<vmem>>, vector<1x128xf32>
    %c0_43 = arith.constant 0 : index
    %c0_44 = arith.constant 0 : index
    %41 = vector.load %arg7[%c0_43, %c0_44] : memref<1x256xf32, #tpu.memory_space<vmem>>, vector<1x128xf32>
    %c0_45 = arith.constant 0 : index
    %c0_46 = arith.constant 0 : index
    %42 = vector.load %arg3[%c0_45, %c0_46] : memref<128x128xf32, #tpu.memory_space<vmem>>, vector<128x128xf32>
    %cst_47 = arith.constant dense<0.000000e+00> : vector<1x128xf32>
    %43 = tpu.matmul %41, %42, %cst_47 {dimension_numbers = #tpu.dot_dimension_numbers<[1], [0], [0], [1], [0, 0, 1, 1], [], []>} : vector<1x128xf32>, vector<128x128xf32>, vector<1x128xf32> -> vector<1x128xf32>
    %44 = arith.addf %40, %43 : vector<1x128xf32>
    %45 = math.tanh %44 : vector<1x128xf32>
    %c0_48 = arith.constant 0 : index
    %c0_49 = arith.constant 0 : index
    %46 = vector.load %arg7[%c0_48, %c0_49] : memref<1x256xf32, #tpu.memory_space<vmem>>, vector<1x128xf32>
    tpu.vector_store %arg7[%c0_48, %c0_49], %45 {strides = array<i32>} : memref<1x256xf32, #tpu.memory_space<vmem>>, vector<1x128xf32>,
    %c0_50 = arith.constant 0 : index
    %c0_51 = arith.constant 0 : index
    %47 = vector.load %arg7[%c0_50, %c0_51] : memref<1x256xf32, #tpu.memory_space<vmem>>, vector<1x256xf32>
    %c0_52 = arith.constant 0 : index
    %c0_53 = arith.constant 0 : index
    %48 = vector.load %arg4[%c0_52, %c0_53] : memref<256x128xf32, #tpu.memory_space<vmem>>, vector<256x128xf32>
    %cst_54 = arith.constant dense<0.000000e+00> : vector<1x128xf32>
    %49 = tpu.matmul %47, %48, %cst_54 {dimension_numbers = #tpu.dot_dimension_numbers<[1], [0], [0], [1], [0, 0, 1, 1], [], []>} : vector<1x256xf32>, vector<256x128xf32>, vector<1x128xf32> -> vector<1x128xf32>
    %50 = math.tanh %49 : vector<1x128xf32>
    %c0_55 = arith.constant 0 : index
    %c128_56 = arith.constant 128 : index
    %51 = vector.load %arg7[%c0_55, %c128_56] : memref<1x256xf32, #tpu.memory_space<vmem>>, vector<1x128xf32>
    tpu.vector_store %arg7[%c0_55, %c128_56], %50 {strides = array<i32>} : memref<1x256xf32, #tpu.memory_space<vmem>>, vector<1x128xf32>,
    %c0_57 = arith.constant 0 : index
    %c0_58 = arith.constant 0 : index
    %52 = vector.load %arg7[%c0_57, %c0_58] : memref<1x256xf32, #tpu.memory_space<vmem>>, vector<1x256xf32>
    %53 = arith.index_cast %c2_i32 : i32 to index
    %c0_59 = arith.constant 0 : index
    %54 = vector.load %arg5[%53, %c0_59] : memref<8x256xf32, #tpu.memory_space<vmem>>, vector<1x256xf32>
    tpu.vector_store %arg5[%53, %c0_59], %52 {strides = array<i32>} : memref<8x256xf32, #tpu.memory_space<vmem>>, vector<1x256xf32>,
    %c3_i32 = arith.constant 3 : i32
    %55 = arith.index_cast %c3_i32 : i32 to index
    %c0_60 = arith.constant 0 : index
    %56 = vector.load %arg6[%55, %c0_60] : memref<8x128xf32, #tpu.memory_space<vmem>>, vector<1x128xf32>
    %c0_61 = arith.constant 0 : index
    %c0_62 = arith.constant 0 : index
    %57 = vector.load %arg7[%c0_61, %c0_62] : memref<1x256xf32, #tpu.memory_space<vmem>>, vector<1x128xf32>
    %c0_63 = arith.constant 0 : index
    %c0_64 = arith.constant 0 : index
    %58 = vector.load %arg3[%c0_63, %c0_64] : memref<128x128xf32, #tpu.memory_space<vmem>>, vector<128x128xf32>
    %cst_65 = arith.constant dense<0.000000e+00> : vector<1x128xf32>
    %59 = tpu.matmul %57, %58, %cst_65 {dimension_numbers = #tpu.dot_dimension_numbers<[1], [0], [0], [1], [0, 0, 1, 1], [], []>} : vector<1x128xf32>, vector<128x128xf32>, vector<1x128xf32> -> vector<1x128xf32>
    %60 = arith.addf %56, %59 : vector<1x128xf32>
    %61 = math.tanh %60 : vector<1x128xf32>
    %c0_66 = arith.constant 0 : index
    %c0_67 = arith.constant 0 : index
    %62 = vector.load %arg7[%c0_66, %c0_67] : memref<1x256xf32, #tpu.memory_space<vmem>>, vector<1x128xf32>
    tpu.vector_store %arg7[%c0_66, %c0_67], %61 {strides = array<i32>} : memref<1x256xf32, #tpu.memory_space<vmem>>, vector<1x128xf32>,
    %c0_68 = arith.constant 0 : index
    %c0_69 = arith.constant 0 : index
    %63 = vector.load %arg7[%c0_68, %c0_69] : memref<1x256xf32, #tpu.memory_space<vmem>>, vector<1x256xf32>
    %c0_70 = arith.constant 0 : index
    %c0_71 = arith.constant 0 : index
    %64 = vector.load %arg4[%c0_70, %c0_71] : memref<256x128xf32, #tpu.memory_space<vmem>>, vector<256x128xf32>
    %cst_72 = arith.constant dense<0.000000e+00> : vector<1x128xf32>
    %65 = tpu.matmul %63, %64, %cst_72 {dimension_numbers = #tpu.dot_dimension_numbers<[1], [0], [0], [1], [0, 0, 1, 1], [], []>} : vector<1x256xf32>, vector<256x128xf32>, vector<1x128xf32> -> vector<1x128xf32>
    %66 = math.tanh %65 : vector<1x128xf32>
    %c0_73 = arith.constant 0 : index
    %c128_74 = arith.constant 128 : index
    %67 = vector.load %arg7[%c0_73, %c128_74] : memref<1x256xf32, #tpu.memory_space<vmem>>, vector<1x128xf32>
    tpu.vector_store %arg7[%c0_73, %c128_74], %66 {strides = array<i32>} : memref<1x256xf32, #tpu.memory_space<vmem>>, vector<1x128xf32>,
    %c0_75 = arith.constant 0 : index
    %c0_76 = arith.constant 0 : index
    %68 = vector.load %arg7[%c0_75, %c0_76] : memref<1x256xf32, #tpu.memory_space<vmem>>, vector<1x256xf32>
    %69 = arith.index_cast %c3_i32 : i32 to index
    %c0_77 = arith.constant 0 : index
    %70 = vector.load %arg5[%69, %c0_77] : memref<8x256xf32, #tpu.memory_space<vmem>>, vector<1x256xf32>
    tpu.vector_store %arg5[%69, %c0_77], %68 {strides = array<i32>} : memref<8x256xf32, #tpu.memory_space<vmem>>, vector<1x256xf32>,
    %c4_i32 = arith.constant 4 : i32
    %71 = arith.index_cast %c4_i32 : i32 to index
    %c0_78 = arith.constant 0 : index
    %72 = vector.load %arg6[%71, %c0_78] : memref<8x128xf32, #tpu.memory_space<vmem>>, vector<1x128xf32>
    %c0_79 = arith.constant 0 : index
    %c0_80 = arith.constant 0 : index
    %73 = vector.load %arg7[%c0_79, %c0_80] : memref<1x256xf32, #tpu.memory_space<vmem>>, vector<1x128xf32>
    %c0_81 = arith.constant 0 : index
    %c0_82 = arith.constant 0 : index
    %74 = vector.load %arg3[%c0_81, %c0_82] : memref<128x128xf32, #tpu.memory_space<vmem>>, vector<128x128xf32>
    %cst_83 = arith.constant dense<0.000000e+00> : vector<1x128xf32>
    %75 = tpu.matmul %73, %74, %cst_83 {dimension_numbers = #tpu.dot_dimension_numbers<[1], [0], [0], [1], [0, 0, 1, 1], [], []>} : vector<1x128xf32>, vector<128x128xf32>, vector<1x128xf32> -> vector<1x128xf32>
    %76 = arith.addf %72, %75 : vector<1x128xf32>
    %77 = math.tanh %76 : vector<1x128xf32>
    %c0_84 = arith.constant 0 : index
    %c0_85 = arith.constant 0 : index
    %78 = vector.load %arg7[%c0_84, %c0_85] : memref<1x256xf32, #tpu.memory_space<vmem>>, vector<1x128xf32>
    tpu.vector_store %arg7[%c0_84, %c0_85], %77 {strides = array<i32>} : memref<1x256xf32, #tpu.memory_space<vmem>>, vector<1x128xf32>,
    %c0_86 = arith.constant 0 : index
    %c0_87 = arith.constant 0 : index
    %79 = vector.load %arg7[%c0_86, %c0_87] : memref<1x256xf32, #tpu.memory_space<vmem>>, vector<1x256xf32>
    %c0_88 = arith.constant 0 : index
    %c0_89 = arith.constant 0 : index
    %80 = vector.load %arg4[%c0_88, %c0_89] : memref<256x128xf32, #tpu.memory_space<vmem>>, vector<256x128xf32>
    %cst_90 = arith.constant dense<0.000000e+00> : vector<1x128xf32>
    %81 = tpu.matmul %79, %80, %cst_90 {dimension_numbers = #tpu.dot_dimension_numbers<[1], [0], [0], [1], [0, 0, 1, 1], [], []>} : vector<1x256xf32>, vector<256x128xf32>, vector<1x128xf32> -> vector<1x128xf32>
    %82 = math.tanh %81 : vector<1x128xf32>
    %c0_91 = arith.constant 0 : index
    %c128_92 = arith.constant 128 : index
    %83 = vector.load %arg7[%c0_91, %c128_92] : memref<1x256xf32, #tpu.memory_space<vmem>>, vector<1x128xf32>
    tpu.vector_store %arg7[%c0_91, %c128_92], %82 {strides = array<i32>} : memref<1x256xf32, #tpu.memory_space<vmem>>, vector<1x128xf32>,
    %c0_93 = arith.constant 0 : index
    %c0_94 = arith.constant 0 : index
    %84 = vector.load %arg7[%c0_93, %c0_94] : memref<1x256xf32, #tpu.memory_space<vmem>>, vector<1x256xf32>
    %85 = arith.index_cast %c4_i32 : i32 to index
    %c0_95 = arith.constant 0 : index
    %86 = vector.load %arg5[%85, %c0_95] : memref<8x256xf32, #tpu.memory_space<vmem>>, vector<1x256xf32>
    tpu.vector_store %arg5[%85, %c0_95], %84 {strides = array<i32>} : memref<8x256xf32, #tpu.memory_space<vmem>>, vector<1x256xf32>,
    %c5_i32 = arith.constant 5 : i32
    %87 = arith.index_cast %c5_i32 : i32 to index
    %c0_96 = arith.constant 0 : index
    %88 = vector.load %arg6[%87, %c0_96] : memref<8x128xf32, #tpu.memory_space<vmem>>, vector<1x128xf32>
    %c0_97 = arith.constant 0 : index
    %c0_98 = arith.constant 0 : index
    %89 = vector.load %arg7[%c0_97, %c0_98] : memref<1x256xf32, #tpu.memory_space<vmem>>, vector<1x128xf32>
    %c0_99 = arith.constant 0 : index
    %c0_100 = arith.constant 0 : index
    %90 = vector.load %arg3[%c0_99, %c0_100] : memref<128x128xf32, #tpu.memory_space<vmem>>, vector<128x128xf32>
    %cst_101 = arith.constant dense<0.000000e+00> : vector<1x128xf32>
    %91 = tpu.matmul %89, %90, %cst_101 {dimension_numbers = #tpu.dot_dimension_numbers<[1], [0], [0], [1], [0, 0, 1, 1], [], []>} : vector<1x128xf32>, vector<128x128xf32>, vector<1x128xf32> -> vector<1x128xf32>
    %92 = arith.addf %88, %91 : vector<1x128xf32>
    %93 = math.tanh %92 : vector<1x128xf32>
    %c0_102 = arith.constant 0 : index
    %c0_103 = arith.constant 0 : index
    %94 = vector.load %arg7[%c0_102, %c0_103] : memref<1x256xf32, #tpu.memory_space<vmem>>, vector<1x128xf32>
    tpu.vector_store %arg7[%c0_102, %c0_103], %93 {strides = array<i32>} : memref<1x256xf32, #tpu.memory_space<vmem>>, vector<1x128xf32>,
    %c0_104 = arith.constant 0 : index
    %c0_105 = arith.constant 0 : index
    %95 = vector.load %arg7[%c0_104, %c0_105] : memref<1x256xf32, #tpu.memory_space<vmem>>, vector<1x256xf32>
    %c0_106 = arith.constant 0 : index
    %c0_107 = arith.constant 0 : index
    %96 = vector.load %arg4[%c0_106, %c0_107] : memref<256x128xf32, #tpu.memory_space<vmem>>, vector<256x128xf32>
    %cst_108 = arith.constant dense<0.000000e+00> : vector<1x128xf32>
    %97 = tpu.matmul %95, %96, %cst_108 {dimension_numbers = #tpu.dot_dimension_numbers<[1], [0], [0], [1], [0, 0, 1, 1], [], []>} : vector<1x256xf32>, vector<256x128xf32>, vector<1x128xf32> -> vector<1x128xf32>
    %98 = math.tanh %97 : vector<1x128xf32>
    %c0_109 = arith.constant 0 : index
    %c128_110 = arith.constant 128 : index
    %99 = vector.load %arg7[%c0_109, %c128_110] : memref<1x256xf32, #tpu.memory_space<vmem>>, vector<1x128xf32>
    tpu.vector_store %arg7[%c0_109, %c128_110], %98 {strides = array<i32>} : memref<1x256xf32, #tpu.memory_space<vmem>>, vector<1x128xf32>,
    %c0_111 = arith.constant 0 : index
    %c0_112 = arith.constant 0 : index
    %100 = vector.load %arg7[%c0_111, %c0_112] : memref<1x256xf32, #tpu.memory_space<vmem>>, vector<1x256xf32>
    %101 = arith.index_cast %c5_i32 : i32 to index
    %c0_113 = arith.constant 0 : index
    %102 = vector.load %arg5[%101, %c0_113] : memref<8x256xf32, #tpu.memory_space<vmem>>, vector<1x256xf32>
    tpu.vector_store %arg5[%101, %c0_113], %100 {strides = array<i32>} : memref<8x256xf32, #tpu.memory_space<vmem>>, vector<1x256xf32>,
    %c6_i32 = arith.constant 6 : i32
    %103 = arith.index_cast %c6_i32 : i32 to index
    %c0_114 = arith.constant 0 : index
    %104 = vector.load %arg6[%103, %c0_114] : memref<8x128xf32, #tpu.memory_space<vmem>>, vector<1x128xf32>
    %c0_115 = arith.constant 0 : index
    %c0_116 = arith.constant 0 : index
    %105 = vector.load %arg7[%c0_115, %c0_116] : memref<1x256xf32, #tpu.memory_space<vmem>>, vector<1x128xf32>
    %c0_117 = arith.constant 0 : index
    %c0_118 = arith.constant 0 : index
    %106 = vector.load %arg3[%c0_117, %c0_118] : memref<128x128xf32, #tpu.memory_space<vmem>>, vector<128x128xf32>
    %cst_119 = arith.constant dense<0.000000e+00> : vector<1x128xf32>
    %107 = tpu.matmul %105, %106, %cst_119 {dimension_numbers = #tpu.dot_dimension_numbers<[1], [0], [0], [1], [0, 0, 1, 1], [], []>} : vector<1x128xf32>, vector<128x128xf32>, vector<1x128xf32> -> vector<1x128xf32>
    %108 = arith.addf %104, %107 : vector<1x128xf32>
    %109 = math.tanh %108 : vector<1x128xf32>
    %c0_120 = arith.constant 0 : index
    %c0_121 = arith.constant 0 : index
    %110 = vector.load %arg7[%c0_120, %c0_121] : memref<1x256xf32, #tpu.memory_space<vmem>>, vector<1x128xf32>
    tpu.vector_store %arg7[%c0_120, %c0_121], %109 {strides = array<i32>} : memref<1x256xf32, #tpu.memory_space<vmem>>, vector<1x128xf32>,
    %c0_122 = arith.constant 0 : index
    %c0_123 = arith.constant 0 : index
    %111 = vector.load %arg7[%c0_122, %c0_123] : memref<1x256xf32, #tpu.memory_space<vmem>>, vector<1x256xf32>
    %c0_124 = arith.constant 0 : index
    %c0_125 = arith.constant 0 : index
    %112 = vector.load %arg4[%c0_124, %c0_125] : memref<256x128xf32, #tpu.memory_space<vmem>>, vector<256x128xf32>
    %cst_126 = arith.constant dense<0.000000e+00> : vector<1x128xf32>
    %113 = tpu.matmul %111, %112, %cst_126 {dimension_numbers = #tpu.dot_dimension_numbers<[1], [0], [0], [1], [0, 0, 1, 1], [], []>} : vector<1x256xf32>, vector<256x128xf32>, vector<1x128xf32> -> vector<1x128xf32>
    %114 = math.tanh %113 : vector<1x128xf32>
    %c0_127 = arith.constant 0 : index
    %c128_128 = arith.constant 128 : index
    %115 = vector.load %arg7[%c0_127, %c128_128] : memref<1x256xf32, #tpu.memory_space<vmem>>, vector<1x128xf32>
    tpu.vector_store %arg7[%c0_127, %c128_128], %114 {strides = array<i32>} : memref<1x256xf32, #tpu.memory_space<vmem>>, vector<1x128xf32>,
    %c0_129 = arith.constant 0 : index
    %c0_130 = arith.constant 0 : index
    %116 = vector.load %arg7[%c0_129, %c0_130] : memref<1x256xf32, #tpu.memory_space<vmem>>, vector<1x256xf32>
    %117 = arith.index_cast %c6_i32 : i32 to index
    %c0_131 = arith.constant 0 : index
    %118 = vector.load %arg5[%117, %c0_131] : memref<8x256xf32, #tpu.memory_space<vmem>>, vector<1x256xf32>
    tpu.vector_store %arg5[%117, %c0_131], %116 {strides = array<i32>} : memref<8x256xf32, #tpu.memory_space<vmem>>, vector<1x256xf32>,
    %c7_i32 = arith.constant 7 : i32
    %119 = arith.index_cast %c7_i32 : i32 to index
    %c0_132 = arith.constant 0 : index
    %120 = vector.load %arg6[%119, %c0_132] : memref<8x128xf32, #tpu.memory_space<vmem>>, vector<1x128xf32>
    %c0_133 = arith.constant 0 : index
    %c0_134 = arith.constant 0 : index
    %121 = vector.load %arg7[%c0_133, %c0_134] : memref<1x256xf32, #tpu.memory_space<vmem>>, vector<1x128xf32>
    %c0_135 = arith.constant 0 : index
    %c0_136 = arith.constant 0 : index
    %122 = vector.load %arg3[%c0_135, %c0_136] : memref<128x128xf32, #tpu.memory_space<vmem>>, vector<128x128xf32>
    %cst_137 = arith.constant dense<0.000000e+00> : vector<1x128xf32>
    %123 = tpu.matmul %121, %122, %cst_137 {dimension_numbers = #tpu.dot_dimension_numbers<[1], [0], [0], [1], [0, 0, 1, 1], [], []>} : vector<1x128xf32>, vector<128x128xf32>, vector<1x128xf32> -> vector<1x128xf32>
    %124 = arith.addf %120, %123 : vector<1x128xf32>
    %125 = math.tanh %124 : vector<1x128xf32>
    %c0_138 = arith.constant 0 : index
    %c0_139 = arith.constant 0 : index
    %126 = vector.load %arg7[%c0_138, %c0_139] : memref<1x256xf32, #tpu.memory_space<vmem>>, vector<1x128xf32>
    tpu.vector_store %arg7[%c0_138, %c0_139], %125 {strides = array<i32>} : memref<1x256xf32, #tpu.memory_space<vmem>>, vector<1x128xf32>,
    %c0_140 = arith.constant 0 : index
    %c0_141 = arith.constant 0 : index
    %127 = vector.load %arg7[%c0_140, %c0_141] : memref<1x256xf32, #tpu.memory_space<vmem>>, vector<1x256xf32>
    %c0_142 = arith.constant 0 : index
    %c0_143 = arith.constant 0 : index
    %128 = vector.load %arg4[%c0_142, %c0_143] : memref<256x128xf32, #tpu.memory_space<vmem>>, vector<256x128xf32>
    %cst_144 = arith.constant dense<0.000000e+00> : vector<1x128xf32>
    %129 = tpu.matmul %127, %128, %cst_144 {dimension_numbers = #tpu.dot_dimension_numbers<[1], [0], [0], [1], [0, 0, 1, 1], [], []>} : vector<1x256xf32>, vector<256x128xf32>, vector<1x128xf32> -> vector<1x128xf32>
    %130 = math.tanh %129 : vector<1x128xf32>
    %c0_145 = arith.constant 0 : index
    %c128_146 = arith.constant 128 : index
    %131 = vector.load %arg7[%c0_145, %c128_146] : memref<1x256xf32, #tpu.memory_space<vmem>>, vector<1x128xf32>
    tpu.vector_store %arg7[%c0_145, %c128_146], %130 {strides = array<i32>} : memref<1x256xf32, #tpu.memory_space<vmem>>, vector<1x128xf32>,
    %c0_147 = arith.constant 0 : index
    %c0_148 = arith.constant 0 : index
    %132 = vector.load %arg7[%c0_147, %c0_148] : memref<1x256xf32, #tpu.memory_space<vmem>>, vector<1x256xf32>
    %133 = arith.index_cast %c7_i32 : i32 to index
    %c0_149 = arith.constant 0 : index
    %134 = vector.load %arg5[%133, %c0_149] : memref<8x256xf32, #tpu.memory_space<vmem>>, vector<1x256xf32>
    tpu.vector_store %arg5[%133, %c0_149], %132 {strides = array<i32>} : memref<8x256xf32, #tpu.memory_space<vmem>>, vector<1x256xf32>,
    %c8_i32 = arith.constant 8 : i32
    return
  }
  func.func @transform_0(%arg0: i32) -> (i32, i32) {
    %c0_i32 = arith.constant 0 : i32
    %c0_i32_0 = arith.constant 0 : i32
    return %arg0, %c0_i32 : i32, i32
  }
  func.func @transform_1(%arg0: i32) -> (i32, i32) {
    %c0_i32 = arith.constant 0 : i32
    %c0_i32_0 = arith.constant 0 : i32
    %c0_i32_1 = arith.constant 0 : i32
    return %c0_i32, %c0_i32_0 : i32, i32
  }
  func.func @transform_2(%arg0: i32) -> (i32, i32) {
    %c0_i32 = arith.constant 0 : i32
    %c0_i32_0 = arith.constant 0 : i32
    %c0_i32_1 = arith.constant 0 : i32
    return %c0_i32, %c0_i32_0 : i32, i32
  }
  func.func @transform_3(%arg0: i32) -> (i32, i32) {
    %c0_i32 = arith.constant 0 : i32
    %c0_i32_0 = arith.constant 0 : i32
    %c0_i32_1 = arith.constant 0 : i32
    return %c0_i32, %c0_i32_0 : i32, i32
  }
  func.func @transform_4(%arg0: i32) -> (i32, i32) {
    %c0_i32 = arith.constant 0 : i32
    %c0_i32_0 = arith.constant 0 : i32
    return %arg0, %c0_i32 : i32, i32
  }
}

</mosaic_0001>

<llo_original>
// kernel: tpu_custom_call.1
$region0: #{tpu_custom_call.1}
  #allocation0 [shape = 'u32[]', space=smem, size = 0x4, offset = 0x4, fixed_abs, tag = 'smem constant byte address 0x4 - core index']
  #allocation1 [shape = 'u32[144,128]{1,0:T(1,128)}', space=vmem, size = 0x12000, scoped, tag = 'internal scratch']
  #allocation2 [shape = 'f32[8,128]{1,0:T(8,128)}', space=vmem, size = 0x1000, scoped, tag = 'scratch operand']
  #allocation3 [shape = 'f32[1,256]{1,0:T(1,128)}', space=vmem, size = 0x400, scoped, tag = 'scratch operand']
  %s0 = inlined_call_operand.vmem [shape: f32[8,4], index: 0, kind: input, shape index: {}]
  %s1 = inlined_call_operand.vmem [shape: f32[4,128], index: 1, kind: input, shape index: {}]
  %s2 = inlined_call_operand.hbm [shape: f32[128,128], index: 2, kind: input, shape index: {}]
  %s3 = inlined_call_operand.hbm [shape: f32[256,128], index: 3, kind: input, shape index: {}]
  %s4 = inlined_call_operand.hbm [shape: f32[8,256], index: 4, kind: output, shape index: {}]
  %s5 = sld [smem:[#allocation0]]
  $region38: #{tpu_custom_call.1} parent=0
    _
  %s7 = ssub.s32 1, %s5
  %s8 = scalar_select 0, %s7, %s5
  $region1: #{tpu_custom_call.1} parent=0
    #allocation4 [shape = 'u8[65536]{0}', space=vmem, size = 0x10000, scoped, tag = 'input window, operand 2, single buffered']
    #allocation5 [shape = 's32[1]{0}', space=sflag, size = 0x4, scoped, tag = 'scoped memory for tpu_custom_call.1']
    #allocation6 [shape = 's32[1]{0}', space=sflag, size = 0x4, scoped, tag = 'scoped memory for tpu_custom_call.1']
    #allocation7 [shape = 'u8[131072]{0}', space=vmem, size = 0x20000, scoped, tag = 'input window, operand 3, single buffered']
    #allocation8 [shape = 's32[1]{0}', space=sflag, size = 0x4, scoped, tag = 'scoped memory for tpu_custom_call.1']
    #allocation9 [shape = 'u8[8192]{0}', space=vmem, size = 0x2000, scoped, tag = 'output window, operand 0, single buffered']
    %9 = vsyncpa [#allocation5], 0
    %10 = vsyncpa [#allocation8], 0
    %11 = vsyncpa [#allocation6], 0
    // Predicated region
    $region2: #{tpu_custom_call.1} parent=1 // pred_check
      _
    $region3: #{tpu_custom_call.1} parent=1 // pred_check_branch
      %13 = sbr.rel (0) target = $region5
    $region4: #{tpu_custom_call.1} parent=1 // pred_region
      _
    $region5: #{tpu_custom_call.1} parent=1 // pred_fallthru
      _
    // Predicated region
    $region6: #{tpu_custom_call.1} parent=1 // pred_check
      _
    $region7: #{tpu_custom_call.1} parent=1 // pred_check_branch
      %15 = sbr.rel (0) target = $region9
    $region8: #{tpu_custom_call.1} parent=1 // pred_region
      _
    $region9: #{tpu_custom_call.1} parent=1 // pred_fallthru
      _
    // Predicated region
    $region10: #{tpu_custom_call.1} parent=1 // pred_check
      _
    $region11: #{tpu_custom_call.1} parent=1 // pred_check_branch
      %17 = sbr.rel (0) target = $region13
    $region12: #{tpu_custom_call.1} parent=1 // pred_region
      %s19 = ssub.s32 2048, 2048
      %20 = vsyncadd [#allocation5], %s19
      %s21 = sshll.u32 [#allocation4], 4
      %s22 = int_to_ptr.vmem [resolvable:$true] %s21
      %27 = dma.hbm_to_vmem [thread:$0]  %s2, 2048, %s22, [#allocation5], 128, 128, 8
    $region13: #{tpu_custom_call.1} parent=1 // pred_fallthru
      _
    // Predicated region
    $region14: #{tpu_custom_call.1} parent=1 // pred_check
      _
    $region15: #{tpu_custom_call.1} parent=1 // pred_check_branch
      %29 = sbr.rel (0) target = $region17
    $region16: #{tpu_custom_call.1} parent=1 // pred_region
      %s31 = ssub.s32 4096, 4096
      %32 = vsyncadd [#allocation8], %s31
      %s33 = sshll.u32 [#allocation7], 4
      %s34 = int_to_ptr.vmem [resolvable:$true] %s33
      %39 = dma.hbm_to_vmem [thread:$0]  %s3, 4096, %s34, [#allocation8], 128, 128, 8
    $region17: #{tpu_custom_call.1} parent=1 // pred_fallthru
      _
    // Predicated region
    $region18: #{tpu_custom_call.1} parent=1 // pred_check
      _
    $region19: #{tpu_custom_call.1} parent=1 // pred_check_branch
      %41 = sbr.rel (0) target = $region21
    $region20: #{tpu_custom_call.1} parent=1 // pred_region
      %42 = dma.done [#allocation5], 2048
    $region21: #{tpu_custom_call.1} parent=1 // pred_fallthru
      _
    // Predicated region
    $region22: #{tpu_custom_call.1} parent=1 // pred_check
      _
    $region23: #{tpu_custom_call.1} parent=1 // pred_check_branch
      %44 = sbr.rel (0) target = $region25
    $region24: #{tpu_custom_call.1} parent=1 // pred_region
      %45 = dma.done [#allocation8], 4096
    $region25: #{tpu_custom_call.1} parent=1 // pred_fallthru
      _
    %p46 = scmp.eq.s32.totalorder 0, 0
    // Predicated region
    $region26: #{tpu_custom_call.1} parent=1 // pred_check
      %p47 = pneg %p46
    $region27: #{tpu_custom_call.1} parent=1 // pred_check_branch
      %49 = sbr.rel (%p47) target = $region29
    $region28: #{tpu_custom_call.1} parent=1 // pred_region
      %v50 = vlaneseq
      %vm51 = vcmp.ge.s32.totalorder %v50, 0
      %vm52 = vcmp.lt.s32.totalorder %v50, 256
      %vm53 = vmand %vm51, %vm52
      %54 = vst.msk [vmem:[#allocation3] sm:$0x3] %vm53, 0.0
    $region29: #{tpu_custom_call.1} parent=1 // pred_fallthru
      _
    %v55 = vld [vmem:[%s0] sm:$0xff]
    %v56 = vld [vmem:[%s1] sm:$0xf]
    %vm57 = vcmask 31744
    %v59 = vsel %vm57, %v55, 0
    %vm61 = vcmask 1043456
    %v63 = vsel %vm61, %v56, 0
    %65 = vmatprep.subr.mxu0 0.0
    %66 = vmatpush1.msra.mxu0 %v63
    %67 = vmatprep.subr.mxu0 0.0
    %68 = vmatpush1.msra.mxu0 0.0
    %69 = vmatprep.subr.mxu0 0.0
    %70 = vmatpush1.msra.mxu0 0.0
    %71 = vmatprep.subr.mxu0 0.0
    %72 = vmatpush1.msra.mxu0 0.0
    %73 = vmatprep.subr.mxu0 0.0
    %74 = vmatpush1.msra.mxu0 0.0
    %75 = vmatprep.subr.mxu0 0.0
    %76 = vmatpush1.msra.mxu0 0.0
    %77 = vmatprep.subr.mxu0 0.0
    %78 = vmatpush1.msra.mxu0 0.0
    %79 = vmatprep.subr.mxu0 0.0
    %80 = vmatpush1.msra.mxu0 0.0
    %81 = vmatprep.subr.mxu0 0.0
    %82 = vmatpush1.msra.mxu0 0.0
    %83 = vmatprep.subr.mxu0 0.0
    %84 = vmatpush1.msra.mxu0 0.0
    %85 = vmatprep.subr.mxu0 0.0
    %86 = vmatpush1.msra.mxu0 0.0
    %87 = vmatprep.subr.mxu0 0.0
    %88 = vmatpush1.msra.mxu0 0.0
    %89 = vmatprep.subr.mxu0 0.0
    %90 = vmatpush1.msra.mxu0 0.0
    %91 = vmatprep.subr.mxu0 0.0
    %92 = vmatpush1.msra.mxu0 0.0
    %93 = vmatprep.subr.mxu0 0.0
    %94 = vmatpush1.msra.mxu0 0.0
    %95 = vmatprep.subr.mxu0 0.0
    %96 = vmatpush1.msra.mxu0 0.0
    %97 = vmatprep.subr.mxu0 0.0
    %98 = vmatpush1.msra.mxu0 0.0
    %99 = vmatprep.subr.mxu0 0.0
    %100 = vmatpush1.msra.mxu0 0.0
    %101 = vmatprep.subr.mxu0 0.0
    %102 = vmatpush1.msra.mxu0 0.0
    %103 = vmatprep.subr.mxu0 0.0
    %104 = vmatpush1.msra.mxu0 0.0
    %105 = vmatprep.subr.mxu0 0.0
    %106 = vmatpush1.msra.mxu0 0.0
    %107 = vmatprep.subr.mxu0 0.0
    %108 = vmatpush1.msra.mxu0 0.0
    %109 = vmatprep.subr.mxu0 0.0
    %110 = vmatpush1.msra.mxu0 0.0
    %111 = vmatprep.subr.mxu0 0.0
    %112 = vmatpush1.msra.mxu0 0.0
    %113 = vmatprep.subr.mxu0 0.0
    %114 = vmatpush1.msra.mxu0 0.0
    %115 = vmatprep.subr.mxu0 0.0
    %116 = vmatpush1.msra.mxu0 0.0
    %117 = vmatprep.subr.mxu0 0.0
    %118 = vmatpush1.msra.mxu0 0.0
    %119 = vmatprep.subr.mxu0 0.0
    %120 = vmatpush1.msra.mxu0 0.0
    %121 = vmatprep.subr.mxu0 0.0
    %122 = vmatpush1.msra.mxu0 0.0
    %123 = vmatprep.subr.mxu0 0.0
    %124 = vmatpush1.msra.mxu0 0.0
    %125 = vmatprep.subr.mxu0 0.0
    %126 = vmatpush1.msra.mxu0 0.0
    %127 = vmatprep.subr.mxu0 0.0
    %128 = vmatpush1.msra.mxu0 0.0
    %129 = vmatprep.mubr.f32.mxu0 0.0
    %130 = vmatmul.mubr.f32.gmra.mrb[0].mxu0 %v59
    %v131 = vpop.f32.mrb[0].mxu0
    %v132 = vadd.f32 0.0, %v131
    %v133 = vpop.f32.mrb[0].mxu0
    %134 = vdwg.mxu0
    %135 = vst [vmem:[#allocation2] sm:$0xff] %v132
    %v136 = vld [vmem:[#allocation2] sm:$0x1]
    %v137 = vld [vmem:[#allocation3] sm:$0x1]
    %v138 = vld [vmem:[#allocation4] sm:$0xff]
    %v139 = vld [vmem:[#allocation4 + $0x8] sm:$0xff]
    %v140 = vld [vmem:[#allocation4 + $0x10] sm:$0xff]
    %v141 = vld [vmem:[#allocation4 + $0x18] sm:$0xff]
    %v142 = vld [vmem:[#allocation4 + $0x20] sm:$0xff]
    %v143 = vld [vmem:[#allocation4 + $0x28] sm:$0xff]
    %v144 = vld [vmem:[#allocation4 + $0x30] sm:$0xff]
    %v145 = vld [vmem:[#allocation4 + $0x38] sm:$0xff]
    %v146 = vld [vmem:[#allocation4 + $0x40] sm:$0xff]
    %v147 = vld [vmem:[#allocation4 + $0x48] sm:$0xff]
    %v148 = vld [vmem:[#allocation4 + $0x50] sm:$0xff]
    %v149 = vld [vmem:[#allocation4 + $0x58] sm:$0xff]
    %v150 = vld [vmem:[#allocation4 + $0x60] sm:$0xff]
    %v151 = vld [vmem:[#allocation4 + $0x68] sm:$0xff]
    %v152 = vld [vmem:[#allocation4 + $0x70] sm:$0xff]
    %v153 = vld [vmem:[#allocation4 + $0x78] sm:$0xff]
    %154 = vmatprep.subr.mxu0 0.0
    %155 = vmatpush1.msra.mxu0 %v138
    %156 = vmatprep.subr.mxu0 0.0
    %157 = vmatpush1.msra.mxu0 %v139
    %158 = vmatprep.subr.mxu0 0.0
    %159 = vmatpush1.msra.mxu0 %v140
    %160 = vmatprep.subr.mxu0 0.0
    %161 = vmatpush1.msra.mxu0 %v141
    %162 = vmatprep.subr.mxu0 0.0
    %163 = vmatpush1.msra.mxu0 %v142
    %164 = vmatprep.subr.mxu0 0.0
    %165 = vmatpush1.msra.mxu0 %v143
    %166 = vmatprep.subr.mxu0 0.0
    %167 = vmatpush1.msra.mxu0 %v144
    %168 = vmatprep.subr.mxu0 0.0
    %169 = vmatpush1.msra.mxu0 %v145
    %170 = vmatprep.subr.mxu0 0.0
    %171 = vmatpush1.msra.mxu0 %v146
    %172 = vmatprep.subr.mxu0 0.0
    %173 = vmatpush1.msra.mxu0 %v147
    %174 = vmatprep.subr.mxu0 0.0
    %175 = vmatpush1.msra.mxu0 %v148
    %176 = vmatprep.subr.mxu0 0.0
    %177 = vmatpush1.msra.mxu0 %v149
    %178 = vmatprep.subr.mxu0 0.0
    %179 = vmatpush1.msra.mxu0 %v150
    %180 = vmatprep.subr.mxu0 0.0
    %181 = vmatpush1.msra.mxu0 %v151
    %182 = vmatprep.subr.mxu0 0.0
    %183 = vmatpush1.msra.mxu0 %v152
    %184 = vmatprep.subr.mxu0 0.0
    %185 = vmatpush1.msra.mxu0 %v153
    %186 = vmatprep.subr.mxu0 0.0
    %187 = vmatpush1.msra.mxu0 0.0
    %188 = vmatprep.subr.mxu0 0.0
    %189 = vmatpush1.msra.mxu0 0.0
    %190 = vmatprep.subr.mxu0 0.0
    %191 = vmatpush1.msra.mxu0 0.0
    %192 = vmatprep.subr.mxu0 0.0
    %193 = vmatpush1.msra.mxu0 0.0
    %194 = vmatprep.subr.mxu0 0.0
    %195 = vmatpush1.msra.mxu0 0.0
    %196 = vmatprep.subr.mxu0 0.0
    %197 = vmatpush1.msra.mxu0 0.0
    %198 = vmatprep.subr.mxu0 0.0
    %199 = vmatpush1.msra.mxu0 0.0
    %200 = vmatprep.subr.mxu0 0.0
    %201 = vmatpush1.msra.mxu0 0.0
    %202 = vmatprep.subr.mxu0 0.0
    %203 = vmatpush1.msra.mxu0 0.0
    %204 = vmatprep.subr.mxu0 0.0
    %205 = vmatpush1.msra.mxu0 0.0
    %206 = vmatprep.subr.mxu0 0.0
    %207 = vmatpush1.msra.mxu0 0.0
    %208 = vmatprep.subr.mxu0 0.0
    %209 = vmatpush1.msra.mxu0 0.0
    %210 = vmatprep.subr.mxu0 0.0
    %211 = vmatpush1.msra.mxu0 0.0
    %212 = vmatprep.subr.mxu0 0.0
    %213 = vmatpush1.msra.mxu0 0.0
    %214 = vmatprep.subr.mxu0 0.0
    %215 = vmatpush1.msra.mxu0 0.0
    %216 = vmatprep.subr.mxu0 0.0
    %217 = vmatpush1.msra.mxu0 0.0
    %218 = vmatprep.mubr.f32.mxu0 0.0
    %219 = vmatmul.mubr.f32.gmra.mrb[0].mxu0 %v137
    %v220 = vpop.f32.mrb[0].mxu0
    %v221 = vadd.f32 0.0, %v220
    %v222 = vpop.f32.mrb[0].mxu0
    %223 = vdwg.mxu0
    %v224 = vadd.f32 %v136, %v221
    %v225 = vtanh.pop %v224
    %v226 = vlaneseq
    %vm227 = vcmp.ge.s32.totalorder %v226, 0
    %vm228 = vcmp.lt.s32.totalorder %v226, 128
    %vm229 = vmand %vm227, %vm228
    %230 = vst.msk [vmem:[#allocation3] sm:$0x1] %vm229, %v225
    %v231 = vld [vmem:[#allocation3] sm:$0x3]
    %v232 = vld [vmem:[#allocation7] sm:$0xff]
    %v233 = vld [vmem:[#allocation7 + $0x8] sm:$0xff]
    %v234 = vld [vmem:[#allocation7 + $0x10] sm:$0xff]
    %v235 = vld [vmem:[#allocation7 + $0x18] sm:$0xff]
    %v236 = vld [vmem:[#allocation7 + $0x20] sm:$0xff]
    %v237 = vld [vmem:[#allocation7 + $0x28] sm:$0xff]
    %v238 = vld [vmem:[#allocation7 + $0x30] sm:$0xff]
    %v239 = vld [vmem:[#allocation7 + $0x38] sm:$0xff]
    %v240 = vld [vmem:[#allocation7 + $0x40] sm:$0xff]
    %v241 = vld [vmem:[#allocation7 + $0x48] sm:$0xff]
    %v242 = vld [vmem:[#allocation7 + $0x50] sm:$0xff]
    %v243 = vld [vmem:[#allocation7 + $0x58] sm:$0xff]
    %v244 = vld [vmem:[#allocation7 + $0x60] sm:$0xff]
    %v245 = vld [vmem:[#allocation7 + $0x68] sm:$0xff]
    %v246 = vld [vmem:[#allocation7 + $0x70] sm:$0xff]
    %v247 = vld [vmem:[#allocation7 + $0x78] sm:$0xff]
    %v248 = vld [vmem:[#allocation7 + $0x80] sm:$0xff]
    %v249 = vld [vmem:[#allocation7 + $0x88] sm:$0xff]
    %v250 = vld [vmem:[#allocation7 + $0x90] sm:$0xff]
    %v251 = vld [vmem:[#allocation7 + $0x98] sm:$0xff]
    %v252 = vld [vmem:[#allocation7 + $0xa0] sm:$0xff]
    %v253 = vld [vmem:[#allocation7 + $0xa8] sm:$0xff]
    %v254 = vld [vmem:[#allocation7 + $0xb0] sm:$0xff]
    %v255 = vld [vmem:[#allocation7 + $0xb8] sm:$0xff]
    %v256 = vld [vmem:[#allocation7 + $0xc0] sm:$0xff]
    %v257 = vld [vmem:[#allocation7 + $0xc8] sm:$0xff]
    %v258 = vld [vmem:[#allocation7 + $0xd0] sm:$0xff]
    %v259 = vld [vmem:[#allocation7 + $0xd8] sm:$0xff]
    %v260 = vld [vmem:[#allocation7 + $0xe0] sm:$0xff]
    %v261 = vld [vmem:[#allocation7 + $0xe8] sm:$0xff]
    %v262 = vld [vmem:[#allocation7 + $0xf0] sm:$0xff]
    %v263 = vld [vmem:[#allocation7 + $0xf8] sm:$0xff]
    %v265 = vlaneseq
    %v266 = vshrl.u32 %v265, 7
    %v267 = vsub.s32 0, %v266
    %v268 = vrot.slane %v231, %v267
    %v269 = vlaneseq
    %v270 = vshrl.u32 %v269, 7
    %v271 = vsub.s32 1, %v270
    %v272 = vrot.slane %v231, %v271
    %275 = vmatprep.subr.mxu0 0.0
    %276 = vmatpush1.msra.mxu0 %v232
    %277 = vmatprep.subr.mxu0 0.0
    %278 = vmatpush1.msra.mxu0 %v233
    %279 = vmatprep.subr.mxu0 0.0
    %280 = vmatpush1.msra.mxu0 %v234
    %281 = vmatprep.subr.mxu0 0.0
    %282 = vmatpush1.msra.mxu0 %v235
    %283 = vmatprep.subr.mxu0 0.0
    %284 = vmatpush1.msra.mxu0 %v236
    %285 = vmatprep.subr.mxu0 0.0
    %286 = vmatpush1.msra.mxu0 %v237
    %287 = vmatprep.subr.mxu0 0.0
    %288 = vmatpush1.msra.mxu0 %v238
    %289 = vmatprep.subr.mxu0 0.0
    %290 = vmatpush1.msra.mxu0 %v239
    %291 = vmatprep.subr.mxu0 0.0
    %292 = vmatpush1.msra.mxu0 %v240
    %293 = vmatprep.subr.mxu0 0.0
    %294 = vmatpush1.msra.mxu0 %v241
    %295 = vmatprep.subr.mxu0 0.0
    %296 = vmatpush1.msra.mxu0 %v242
    %297 = vmatprep.subr.mxu0 0.0
    %298 = vmatpush1.msra.mxu0 %v243
    %299 = vmatprep.subr.mxu0 0.0
    %300 = vmatpush1.msra.mxu0 %v244
    %301 = vmatprep.subr.mxu0 0.0
    %302 = vmatpush1.msra.mxu0 %v245
    %303 = vmatprep.subr.mxu0 0.0
    %304 = vmatpush1.msra.mxu0 %v246
    %305 = vmatprep.subr.mxu0 0.0
    %306 = vmatpush1.msra.mxu0 %v247
    %307 = vmatprep.subr.mxu0 0.0
    %308 = vmatpush1.msra.mxu0 %v248
    %309 = vmatprep.subr.mxu0 0.0
    %310 = vmatpush1.msra.mxu0 %v249
    %311 = vmatprep.subr.mxu0 0.0
    %312 = vmatpush1.msra.mxu0 %v250
    %313 = vmatprep.subr.mxu0 0.0
    %314 = vmatpush1.msra.mxu0 %v251
    %315 = vmatprep.subr.mxu0 0.0
    %316 = vmatpush1.msra.mxu0 %v252
    %317 = vmatprep.subr.mxu0 0.0
    %318 = vmatpush1.msra.mxu0 %v253
    %319 = vmatprep.subr.mxu0 0.0
    %320 = vmatpush1.msra.mxu0 %v254
    %321 = vmatprep.subr.mxu0 0.0
    %322 = vmatpush1.msra.mxu0 %v255
    %323 = vmatprep.subr.mxu0 0.0
    %324 = vmatpush1.msra.mxu0 %v256
    %325 = vmatprep.subr.mxu0 0.0
    %326 = vmatpush1.msra.mxu0 %v257
    %327 = vmatprep.subr.mxu0 0.0
    %328 = vmatpush1.msra.mxu0 %v258
    %329 = vmatprep.subr.mxu0 0.0
    %330 = vmatpush1.msra.mxu0 %v259
    %331 = vmatprep.subr.mxu0 0.0
    %332 = vmatpush1.msra.mxu0 %v260
    %333 = vmatprep.subr.mxu0 0.0
    %334 = vmatpush1.msra.mxu0 %v261
    %335 = vmatprep.subr.mxu0 0.0
    %336 = vmatpush1.msra.mxu0 %v262
    %337 = vmatprep.subr.mxu0 0.0
    %338 = vmatpush1.msra.mxu0 %v263
    %339 = vmatprep.mubr.f32.mxu0 %v272
    %340 = vmatmul.mubr.f32.gmra.mrb[0].mxu0 %v268
    %v341 = vpop.f32.mrb[0].mxu0
    %v342 = vadd.f32 0.0, %v341
    %v343 = vpop.f32.mrb[0].mxu0
    %344 = vdwg.mxu0
    %v345 = vtanh.pop %v342
    %346 = vst.msk [vmem:[#allocation3 + $0x1] sm:$0x1] %vm229, %v345
    %v347 = vld [vmem:[#allocation3] sm:$0x3]
    %vm348 = vcmp.lt.s32.totalorder %v226, 256
    %vm349 = vmand %vm227, %vm348
    %350 = vst.msk [vmem:[#allocation9] ss:$8 sm:$0x3] %vm349, %v347
    %351 = vst.msk [vmem:[#allocation9] ss:$8 sm:$0x0] %vm349, %v347
    %v352 = vld [vmem:[#allocation2 + $0x1] sm:$0x1]
    %v353 = vld [vmem:[#allocation3] sm:$0x1]
    %v354 = vld [vmem:[#allocation4] sm:$0xff]
    %v355 = vld [vmem:[#allocation4 + $0x8] sm:$0xff]
    %v356 = vld [vmem:[#allocation4 + $0x10] sm:$0xff]
    %v357 = vld [vmem:[#allocation4 + $0x18] sm:$0xff]
    %v358 = vld [vmem:[#allocation4 + $0x20] sm:$0xff]
    %v359 = vld [vmem:[#allocation4 + $0x28] sm:$0xff]
    %v360 = vld [vmem:[#allocation4 + $0x30] sm:$0xff]
    %v361 = vld [vmem:[#allocation4 + $0x38] sm:$0xff]
    %v362 = vld [vmem:[#allocation4 + $0x40] sm:$0xff]
    %v363 = vld [vmem:[#allocation4 + $0x48] sm:$0xff]
    %v364 = vld [vmem:[#allocation4 + $0x50] sm:$0xff]
    %v365 = vld [vmem:[#allocation4 + $0x58] sm:$0xff]
    %v366 = vld [vmem:[#allocation4 + $0x60] sm:$0xff]
    %v367 = vld [vmem:[#allocation4 + $0x68] sm:$0xff]
    %v368 = vld [vmem:[#allocation4 + $0x70] sm:$0xff]
    %v369 = vld [vmem:[#allocation4 + $0x78] sm:$0xff]
    %370 = vmatprep.subr.mxu0 0.0
    %371 = vmatpush1.msra.mxu0 %v354
    %372 = vmatprep.subr.mxu0 0.0
    %373 = vmatpush1.msra.mxu0 %v355
    %374 = vmatprep.subr.mxu0 0.0
    %375 = vmatpush1.msra.mxu0 %v356
    %376 = vmatprep.subr.mxu0 0.0
    %377 = vmatpush1.msra.mxu0 %v357
    %378 = vmatprep.subr.mxu0 0.0
    %379 = vmatpush1.msra.mxu0 %v358
    %380 = vmatprep.subr.mxu0 0.0
    %381 = vmatpush1.msra.mxu0 %v359
    %382 = vmatprep.subr.mxu0 0.0
    %383 = vmatpush1.msra.mxu0 %v360
    %384 = vmatprep.subr.mxu0 0.0
    %385 = vmatpush1.msra.mxu0 %v361
    %386 = vmatprep.subr.mxu0 0.0
    %387 = vmatpush1.msra.mxu0 %v362
    %388 = vmatprep.subr.mxu0 0.0
    %389 = vmatpush1.msra.mxu0 %v363
    %390 = vmatprep.subr.mxu0 0.0
    %391 = vmatpush1.msra.mxu0 %v364
    %392 = vmatprep.subr.mxu0 0.0
    %393 = vmatpush1.msra.mxu0 %v365
    %394 = vmatprep.subr.mxu0 0.0
    %395 = vmatpush1.msra.mxu0 %v366
    %396 = vmatprep.subr.mxu0 0.0
    %397 = vmatpush1.msra.mxu0 %v367
    %398 = vmatprep.subr.mxu0 0.0
    %399 = vmatpush1.msra.mxu0 %v368
    %400 = vmatprep.subr.mxu0 0.0
    %401 = vmatpush1.msra.mxu0 %v369
    %402 = vmatprep.subr.mxu0 0.0
    %403 = vmatpush1.msra.mxu0 0.0
    %404 = vmatprep.subr.mxu0 0.0
    %405 = vmatpush1.msra.mxu0 0.0
    %406 = vmatprep.subr.mxu0 0.0
    %407 = vmatpush1.msra.mxu0 0.0
    %408 = vmatprep.subr.mxu0 0.0
    %409 = vmatpush1.msra.mxu0 0.0
    %410 = vmatprep.subr.mxu0 0.0
    %411 = vmatpush1.msra.mxu0 0.0
    %412 = vmatprep.subr.mxu0 0.0
    %413 = vmatpush1.msra.mxu0 0.0
    %414 = vmatprep.subr.mxu0 0.0
    %415 = vmatpush1.msra.mxu0 0.0
    %416 = vmatprep.subr.mxu0 0.0
    %417 = vmatpush1.msra.mxu0 0.0
    %418 = vmatprep.subr.mxu0 0.0
    %419 = vmatpush1.msra.mxu0 0.0
    %420 = vmatprep.subr.mxu0 0.0
    %421 = vmatpush1.msra.mxu0 0.0
    %422 = vmatprep.subr.mxu0 0.0
    %423 = vmatpush1.msra.mxu0 0.0
    %424 = vmatprep.subr.mxu0 0.0
    %425 = vmatpush1.msra.mxu0 0.0
    %426 = vmatprep.subr.mxu0 0.0
    %427 = vmatpush1.msra.mxu0 0.0
    %428 = vmatprep.subr.mxu0 0.0
    %429 = vmatpush1.msra.mxu0 0.0
    %430 = vmatprep.subr.mxu0 0.0
    %431 = vmatpush1.msra.mxu0 0.0
    %432 = vmatprep.subr.mxu0 0.0
    %433 = vmatpush1.msra.mxu0 0.0
    %434 = vmatprep.mubr.f32.mxu0 0.0
    %435 = vmatmul.mubr.f32.gmra.mrb[0].mxu0 %v353
    %v436 = vpop.f32.mrb[0].mxu0
    %v437 = vadd.f32 0.0, %v436
    %v438 = vpop.f32.mrb[0].mxu0
    %439 = vdwg.mxu0
    %v440 = vadd.f32 %v352, %v437
    %v441 = vtanh.pop %v440
    %442 = vst.msk [vmem:[#allocation3] sm:$0x1] %vm229, %v441
    %v443 = vld [vmem:[#allocation3] sm:$0x3]
    %v444 = vld [vmem:[#allocation7] sm:$0xff]
    %v445 = vld [vmem:[#allocation7 + $0x8] sm:$0xff]
    %v446 = vld [vmem:[#allocation7 + $0x10] sm:$0xff]
    %v447 = vld [vmem:[#allocation7 + $0x18] sm:$0xff]
    %v448 = vld [vmem:[#allocation7 + $0x20] sm:$0xff]
    %v449 = vld [vmem:[#allocation7 + $0x28] sm:$0xff]
    %v450 = vld [vmem:[#allocation7 + $0x30] sm:$0xff]
    %v451 = vld [vmem:[#allocation7 + $0x38] sm:$0xff]
    %v452 = vld [vmem:[#allocation7 + $0x40] sm:$0xff]
    %v453 = vld [vmem:[#allocation7 + $0x48] sm:$0xff]
    %v454 = vld [vmem:[#allocation7 + $0x50] sm:$0xff]
    %v455 = vld [vmem:[#allocation7 + $0x58] sm:$0xff]
    %v456 = vld [vmem:[#allocation7 + $0x60] sm:$0xff]
    %v457 = vld [vmem:[#allocation7 + $0x68] sm:$0xff]
    %v458 = vld [vmem:[#allocation7 + $0x70] sm:$0xff]
    %v459 = vld [vmem:[#allocation7 + $0x78] sm:$0xff]
    %v460 = vld [vmem:[#allocation7 + $0x80] sm:$0xff]
    %v461 = vld [vmem:[#allocation7 + $0x88] sm:$0xff]
    %v462 = vld [vmem:[#allocation7 + $0x90] sm:$0xff]
    %v463 = vld [vmem:[#allocation7 + $0x98] sm:$0xff]
    %v464 = vld [vmem:[#allocation7 + $0xa0] sm:$0xff]
    %v465 = vld [vmem:[#allocation7 + $0xa8] sm:$0xff]
    %v466 = vld [vmem:[#allocation7 + $0xb0] sm:$0xff]
    %v467 = vld [vmem:[#allocation7 + $0xb8] sm:$0xff]
    %v468 = vld [vmem:[#allocation7 + $0xc0] sm:$0xff]
    %v469 = vld [vmem:[#allocation7 + $0xc8] sm:$0xff]
    %v470 = vld [vmem:[#allocation7 + $0xd0] sm:$0xff]
    %v471 = vld [vmem:[#allocation7 + $0xd8] sm:$0xff]
    %v472 = vld [vmem:[#allocation7 + $0xe0] sm:$0xff]
    %v473 = vld [vmem:[#allocation7 + $0xe8] sm:$0xff]
    %v474 = vld [vmem:[#allocation7 + $0xf0] sm:$0xff]
    %v475 = vld [vmem:[#allocation7 + $0xf8] sm:$0xff]
    %v477 = vlaneseq
    %v478 = vshrl.u32 %v477, 7
    %v479 = vsub.s32 0, %v478
    %v480 = vrot.slane %v443, %v479
    %v481 = vlaneseq
    %v482 = vshrl.u32 %v481, 7
    %v483 = vsub.s32 1, %v482
    %v484 = vrot.slane %v443, %v483
    %487 = vmatprep.subr.mxu0 0.0
    %488 = vmatpush1.msra.mxu0 %v444
    %489 = vmatprep.subr.mxu0 0.0
    %490 = vmatpush1.msra.mxu0 %v445
    %491 = vmatprep.subr.mxu0 0.0
    %492 = vmatpush1.msra.mxu0 %v446
    %493 = vmatprep.subr.mxu0 0.0
    %494 = vmatpush1.msra.mxu0 %v447
    %495 = vmatprep.subr.mxu0 0.0
    %496 = vmatpush1.msra.mxu0 %v448
    %497 = vmatprep.subr.mxu0 0.0
    %498 = vmatpush1.msra.mxu0 %v449
    %499 = vmatprep.subr.mxu0 0.0
    %500 = vmatpush1.msra.mxu0 %v450
    %501 = vmatprep.subr.mxu0 0.0
    %502 = vmatpush1.msra.mxu0 %v451
    %503 = vmatprep.subr.mxu0 0.0
    %504 = vmatpush1.msra.mxu0 %v452
    %505 = vmatprep.subr.mxu0 0.0
    %506 = vmatpush1.msra.mxu0 %v453
    %507 = vmatprep.subr.mxu0 0.0
    %508 = vmatpush1.msra.mxu0 %v454
    %509 = vmatprep.subr.mxu0 0.0
    %510 = vmatpush1.msra.mxu0 %v455
    %511 = vmatprep.subr.mxu0 0.0
    %512 = vmatpush1.msra.mxu0 %v456
    %513 = vmatprep.subr.mxu0 0.0
    %514 = vmatpush1.msra.mxu0 %v457
    %515 = vmatprep.subr.mxu0 0.0
    %516 = vmatpush1.msra.mxu0 %v458
    %517 = vmatprep.subr.mxu0 0.0
    %518 = vmatpush1.msra.mxu0 %v459
    %519 = vmatprep.subr.mxu0 0.0
    %520 = vmatpush1.msra.mxu0 %v460
    %521 = vmatprep.subr.mxu0 0.0
    %522 = vmatpush1.msra.mxu0 %v461
    %523 = vmatprep.subr.mxu0 0.0
    %524 = vmatpush1.msra.mxu0 %v462
    %525 = vmatprep.subr.mxu0 0.0
    %526 = vmatpush1.msra.mxu0 %v463
    %527 = vmatprep.subr.mxu0 0.0
    %528 = vmatpush1.msra.mxu0 %v464
    %529 = vmatprep.subr.mxu0 0.0
    %530 = vmatpush1.msra.mxu0 %v465
    %531 = vmatprep.subr.mxu0 0.0
    %532 = vmatpush1.msra.mxu0 %v466
    %533 = vmatprep.subr.mxu0 0.0
    %534 = vmatpush1.msra.mxu0 %v467
    %535 = vmatprep.subr.mxu0 0.0
    %536 = vmatpush1.msra.mxu0 %v468
    %537 = vmatprep.subr.mxu0 0.0
    %538 = vmatpush1.msra.mxu0 %v469
    %539 = vmatprep.subr.mxu0 0.0
    %540 = vmatpush1.msra.mxu0 %v470
    %541 = vmatprep.subr.mxu0 0.0
    %542 = vmatpush1.msra.mxu0 %v471
    %543 = vmatprep.subr.mxu0 0.0
    %544 = vmatpush1.msra.mxu0 %v472
    %545 = vmatprep.subr.mxu0 0.0
    %546 = vmatpush1.msra.mxu0 %v473
    %547 = vmatprep.subr.mxu0 0.0
    %548 = vmatpush1.msra.mxu0 %v474
    %549 = vmatprep.subr.mxu0 0.0
    %550 = vmatpush1.msra.mxu0 %v475
    %551 = vmatprep.mubr.f32.mxu0 %v484
    %552 = vmatmul.mubr.f32.gmra.mrb[0].mxu0 %v480
    %v553 = vpop.f32.mrb[0].mxu0
    %v554 = vadd.f32 0.0, %v553
    %v555 = vpop.f32.mrb[0].mxu0
    %556 = vdwg.mxu0
    %v557 = vtanh.pop %v554
    %558 = vst.msk [vmem:[#allocation3 + $0x1] sm:$0x1] %vm229, %v557
    %v559 = vld [vmem:[#allocation3] sm:$0x3]
    %s560 = scalar_lea.vmem [#allocation9], 1
    %561 = vst.msk [vmem:[%s560] ss:$8 sm:$0x3] %vm349, %v559
    %562 = vst.msk [vmem:[%s560] ss:$8 sm:$0x0] %vm349, %v559
    %v563 = vld [vmem:[#allocation2 + $0x2] sm:$0x1]
    %v564 = vld [vmem:[#allocation3] sm:$0x1]
    %v565 = vld [vmem:[#allocation4] sm:$0xff]
    %v566 = vld [vmem:[#allocation4 + $0x8] sm:$0xff]
    %v567 = vld [vmem:[#allocation4 + $0x10] sm:$0xff]
    %v568 = vld [vmem:[#allocation4 + $0x18] sm:$0xff]
    %v569 = vld [vmem:[#allocation4 + $0x20] sm:$0xff]
    %v570 = vld [vmem:[#allocation4 + $0x28] sm:$0xff]
    %v571 = vld [vmem:[#allocation4 + $0x30] sm:$0xff]
    %v572 = vld [vmem:[#allocation4 + $0x38] sm:$0xff]
    %v573 = vld [vmem:[#allocation4 + $0x40] sm:$0xff]
    %v574 = vld [vmem:[#allocation4 + $0x48] sm:$0xff]
    %v575 = vld [vmem:[#allocation4 + $0x50] sm:$0xff]
    %v576 = vld [vmem:[#allocation4 + $0x58] sm:$0xff]
    %v577 = vld [vmem:[#allocation4 + $0x60] sm:$0xff]
    %v578 = vld [vmem:[#allocation4 + $0x68] sm:$0xff]
    %v579 = vld [vmem:[#allocation4 + $0x70] sm:$0xff]
    %v580 = vld [vmem:[#allocation4 + $0x78] sm:$0xff]
    %581 = vmatprep.subr.mxu0 0.0
    %582 = vmatpush1.msra.mxu0 %v565
    %583 = vmatprep.subr.mxu0 0.0
    %584 = vmatpush1.msra.mxu0 %v566
    %585 = vmatprep.subr.mxu0 0.0
    %586 = vmatpush1.msra.mxu0 %v567
    %587 = vmatprep.subr.mxu0 0.0
    %588 = vmatpush1.msra.mxu0 %v568
    %589 = vmatprep.subr.mxu0 0.0
    %590 = vmatpush1.msra.mxu0 %v569
    %591 = vmatprep.subr.mxu0 0.0
    %592 = vmatpush1.msra.mxu0 %v570
    %593 = vmatprep.subr.mxu0 0.0
    %594 = vmatpush1.msra.mxu0 %v571
    %595 = vmatprep.subr.mxu0 0.0
    %596 = vmatpush1.msra.mxu0 %v572
    %597 = vmatprep.subr.mxu0 0.0
    %598 = vmatpush1.msra.mxu0 %v573
    %599 = vmatprep.subr.mxu0 0.0
    %600 = vmatpush1.msra.mxu0 %v574
    %601 = vmatprep.subr.mxu0 0.0
    %602 = vmatpush1.msra.mxu0 %v575
    %603 = vmatprep.subr.mxu0 0.0
    %604 = vmatpush1.msra.mxu0 %v576
    %605 = vmatprep.subr.mxu0 0.0
    %606 = vmatpush1.msra.mxu0 %v577
    %607 = vmatprep.subr.mxu0 0.0
    %608 = vmatpush1.msra.mxu0 %v578
    %609 = vmatprep.subr.mxu0 0.0
    %610 = vmatpush1.msra.mxu0 %v579
    %611 = vmatprep.subr.mxu0 0.0
    %612 = vmatpush1.msra.mxu0 %v580
    %613 = vmatprep.subr.mxu0 0.0
    %614 = vmatpush1.msra.mxu0 0.0
    %615 = vmatprep.subr.mxu0 0.0
    %616 = vmatpush1.msra.mxu0 0.0
    %617 = vmatprep.subr.mxu0 0.0
    %618 = vmatpush1.msra.mxu0 0.0
    %619 = vmatprep.subr.mxu0 0.0
    %620 = vmatpush1.msra.mxu0 0.0
    %621 = vmatprep.subr.mxu0 0.0
    %622 = vmatpush1.msra.mxu0 0.0
    %623 = vmatprep.subr.mxu0 0.0
    %624 = vmatpush1.msra.mxu0 0.0
    %625 = vmatprep.subr.mxu0 0.0
    %626 = vmatpush1.msra.mxu0 0.0
    %627 = vmatprep.subr.mxu0 0.0
    %628 = vmatpush1.msra.mxu0 0.0
    %629 = vmatprep.subr.mxu0 0.0
    %630 = vmatpush1.msra.mxu0 0.0
    %631 = vmatprep.subr.mxu0 0.0
    %632 = vmatpush1.msra.mxu0 0.0
    %633 = vmatprep.subr.mxu0 0.0
    %634 = vmatpush1.msra.mxu0 0.0
    %635 = vmatprep.subr.mxu0 0.0
    %636 = vmatpush1.msra.mxu0 0.0
    %637 = vmatprep.subr.mxu0 0.0
    %638 = vmatpush1.msra.mxu0 0.0
    %639 = vmatprep.subr.mxu0 0.0
    %640 = vmatpush1.msra.mxu0 0.0
    %641 = vmatprep.subr.mxu0 0.0
    %642 = vmatpush1.msra.mxu0 0.0
    %643 = vmatprep.subr.mxu0 0.0
    %644 = vmatpush1.msra.mxu0 0.0
    %645 = vmatprep.mubr.f32.mxu0 0.0
    %646 = vmatmul.mubr.f32.gmra.mrb[0].mxu0 %v564
    %v647 = vpop.f32.mrb[0].mxu0
    %v648 = vadd.f32 0.0, %v647
    %v649 = vpop.f32.mrb[0].mxu0
    %650 = vdwg.mxu0
    %v651 = vadd.f32 %v563, %v648
    %v652 = vtanh.pop %v651
    %653 = vst.msk [vmem:[#allocation3] sm:$0x1] %vm229, %v652
    %v654 = vld [vmem:[#allocation3] sm:$0x3]
    %v655 = vld [vmem:[#allocation7] sm:$0xff]
    %v656 = vld [vmem:[#allocation7 + $0x8] sm:$0xff]
    %v657 = vld [vmem:[#allocation7 + $0x10] sm:$0xff]
    %v658 = vld [vmem:[#allocation7 + $0x18] sm:$0xff]
    %v659 = vld [vmem:[#allocation7 + $0x20] sm:$0xff]
    %v660 = vld [vmem:[#allocation7 + $0x28] sm:$0xff]
    %v661 = vld [vmem:[#allocation7 + $0x30] sm:$0xff]
    %v662 = vld [vmem:[#allocation7 + $0x38] sm:$0xff]
    %v663 = vld [vmem:[#allocation7 + $0x40] sm:$0xff]
    %v664 = vld [vmem:[#allocation7 + $0x48] sm:$0xff]
    %v665 = vld [vmem:[#allocation7 + $0x50] sm:$0xff]
    %v666 = vld [vmem:[#allocation7 + $0x58] sm:$0xff]
    %v667 = vld [vmem:[#allocation7 + $0x60] sm:$0xff]
    %v668 = vld [vmem:[#allocation7 + $0x68] sm:$0xff]
    %v669 = vld [vmem:[#allocation7 + $0x70] sm:$0xff]
    %v670 = vld [vmem:[#allocation7 + $0x78] sm:$0xff]
    %v671 = vld [vmem:[#allocation7 + $0x80] sm:$0xff]
    %v672 = vld [vmem:[#allocation7 + $0x88] sm:$0xff]
    %v673 = vld [vmem:[#allocation7 + $0x90] sm:$0xff]
    %v674 = vld [vmem:[#allocation7 + $0x98] sm:$0xff]
    %v675 = vld [vmem:[#allocation7 + $0xa0] sm:$0xff]
    %v676 = vld [vmem:[#allocation7 + $0xa8] sm:$0xff]
    %v677 = vld [vmem:[#allocation7 + $0xb0] sm:$0xff]
    %v678 = vld [vmem:[#allocation7 + $0xb8] sm:$0xff]
    %v679 = vld [vmem:[#allocation7 + $0xc0] sm:$0xff]
    %v680 = vld [vmem:[#allocation7 + $0xc8] sm:$0xff]
    %v681 = vld [vmem:[#allocation7 + $0xd0] sm:$0xff]
    %v682 = vld [vmem:[#allocation7 + $0xd8] sm:$0xff]
    %v683 = vld [vmem:[#allocation7 + $0xe0] sm:$0xff]
    %v684 = vld [vmem:[#allocation7 + $0xe8] sm:$0xff]
    %v685 = vld [vmem:[#allocation7 + $0xf0] sm:$0xff]
    %v686 = vld [vmem:[#allocation7 + $0xf8] sm:$0xff]
    %v688 = vlaneseq
    %v689 = vshrl.u32 %v688, 7
    %v690 = vsub.s32 0, %v689
    %v691 = vrot.slane %v654, %v690
    %v692 = vlaneseq
    %v693 = vshrl.u32 %v692, 7
    %v694 = vsub.s32 1, %v693
    %v695 = vrot.slane %v654, %v694
    %698 = vmatprep.subr.mxu0 0.0
    %699 = vmatpush1.msra.mxu0 %v655
    %700 = vmatprep.subr.mxu0 0.0
    %701 = vmatpush1.msra.mxu0 %v656
    %702 = vmatprep.subr.mxu0 0.0
    %703 = vmatpush1.msra.mxu0 %v657
    %704 = vmatprep.subr.mxu0 0.0
    %705 = vmatpush1.msra.mxu0 %v658
    %706 = vmatprep.subr.mxu0 0.0
    %707 = vmatpush1.msra.mxu0 %v659
    %708 = vmatprep.subr.mxu0 0.0
    %709 = vmatpush1.msra.mxu0 %v660
    %710 = vmatprep.subr.mxu0 0.0
    %711 = vmatpush1.msra.mxu0 %v661
    %712 = vmatprep.subr.mxu0 0.0
    %713 = vmatpush1.msra.mxu0 %v662
    %714 = vmatprep.subr.mxu0 0.0
    %715 = vmatpush1.msra.mxu0 %v663
    %716 = vmatprep.subr.mxu0 0.0
    %717 = vmatpush1.msra.mxu0 %v664
    %718 = vmatprep.subr.mxu0 0.0
    %719 = vmatpush1.msra.mxu0 %v665
    %720 = vmatprep.subr.mxu0 0.0
    %721 = vmatpush1.msra.mxu0 %v666
    %722 = vmatprep.subr.mxu0 0.0
    %723 = vmatpush1.msra.mxu0 %v667
    %724 = vmatprep.subr.mxu0 0.0
    %725 = vmatpush1.msra.mxu0 %v668
    %726 = vmatprep.subr.mxu0 0.0
    %727 = vmatpush1.msra.mxu0 %v669
    %728 = vmatprep.subr.mxu0 0.0
    %729 = vmatpush1.msra.mxu0 %v670
    %730 = vmatprep.subr.mxu0 0.0
    %731 = vmatpush1.msra.mxu0 %v671
    %732 = vmatprep.subr.mxu0 0.0
    %733 = vmatpush1.msra.mxu0 %v672
    %734 = vmatprep.subr.mxu0 0.0
    %735 = vmatpush1.msra.mxu0 %v673
    %736 = vmatprep.subr.mxu0 0.0
    %737 = vmatpush1.msra.mxu0 %v674
    %738 = vmatprep.subr.mxu0 0.0
    %739 = vmatpush1.msra.mxu0 %v675
    %740 = vmatprep.subr.mxu0 0.0
    %741 = vmatpush1.msra.mxu0 %v676
    %742 = vmatprep.subr.mxu0 0.0
    %743 = vmatpush1.msra.mxu0 %v677
    %744 = vmatprep.subr.mxu0 0.0
    %745 = vmatpush1.msra.mxu0 %v678
    %746 = vmatprep.subr.mxu0 0.0
    %747 = vmatpush1.msra.mxu0 %v679
    %748 = vmatprep.subr.mxu0 0.0
    %749 = vmatpush1.msra.mxu0 %v680
    %750 = vmatprep.subr.mxu0 0.0
    %751 = vmatpush1.msra.mxu0 %v681
    %752 = vmatprep.subr.mxu0 0.0
    %753 = vmatpush1.msra.mxu0 %v682
    %754 = vmatprep.subr.mxu0 0.0
    %755 = vmatpush1.msra.mxu0 %v683
    %756 = vmatprep.subr.mxu0 0.0
    %757 = vmatpush1.msra.mxu0 %v684
    %758 = vmatprep.subr.mxu0 0.0
    %759 = vmatpush1.msra.mxu0 %v685
    %760 = vmatprep.subr.mxu0 0.0
    %761 = vmatpush1.msra.mxu0 %v686
    %762 = vmatprep.mubr.f32.mxu0 %v695
    %763 = vmatmul.mubr.f32.gmra.mrb[0].mxu0 %v691
    %v764 = vpop.f32.mrb[0].mxu0
    %v765 = vadd.f32 0.0, %v764
    %v766 = vpop.f32.mrb[0].mxu0
    %767 = vdwg.mxu0
    %v768 = vtanh.pop %v765
    %769 = vst.msk [vmem:[#allocation3 + $0x1] sm:$0x1] %vm229, %v768
    %v770 = vld [vmem:[#allocation3] sm:$0x3]
    %s771 = scalar_lea.vmem [#allocation9], 2
    %772 = vst.msk [vmem:[%s771] ss:$8 sm:$0x3] %vm349, %v770
    %773 = vst.msk [vmem:[%s771] ss:$8 sm:$0x0] %vm349, %v770
    %v774 = vld [vmem:[#allocation2 + $0x3] sm:$0x1]
    %v775 = vld [vmem:[#allocation3] sm:$0x1]
    %v776 = vld [vmem:[#allocation4] sm:$0xff]
    %v777 = vld [vmem:[#allocation4 + $0x8] sm:$0xff]
    %v778 = vld [vmem:[#allocation4 + $0x10] sm:$0xff]
    %v779 = vld [vmem:[#allocation4 + $0x18] sm:$0xff]
    %v780 = vld [vmem:[#allocation4 + $0x20] sm:$0xff]
    %v781 = vld [vmem:[#allocation4 + $0x28] sm:$0xff]
    %v782 = vld [vmem:[#allocation4 + $0x30] sm:$0xff]
    %v783 = vld [vmem:[#allocation4 + $0x38] sm:$0xff]
    %v784 = vld [vmem:[#allocation4 + $0x40] sm:$0xff]
    %v785 = vld [vmem:[#allocation4 + $0x48] sm:$0xff]
    %v786 = vld [vmem:[#allocation4 + $0x50] sm:$0xff]
    %v787 = vld [vmem:[#allocation4 + $0x58] sm:$0xff]
    %v788 = vld [vmem:[#allocation4 + $0x60] sm:$0xff]
    %v789 = vld [vmem:[#allocation4 + $0x68] sm:$0xff]
    %v790 = vld [vmem:[#allocation4 + $0x70] sm:$0xff]
    %v791 = vld [vmem:[#allocation4 + $0x78] sm:$0xff]
    %792 = vmatprep.subr.mxu0 0.0
    %793 = vmatpush1.msra.mxu0 %v776
    %794 = vmatprep.subr.mxu0 0.0
    %795 = vmatpush1.msra.mxu0 %v777
    %796 = vmatprep.subr.mxu0 0.0
    %797 = vmatpush1.msra.mxu0 %v778
    %798 = vmatprep.subr.mxu0 0.0
    %799 = vmatpush1.msra.mxu0 %v779
    %800 = vmatprep.subr.mxu0 0.0
    %801 = vmatpush1.msra.mxu0 %v780
    %802 = vmatprep.subr.mxu0 0.0
    %803 = vmatpush1.msra.mxu0 %v781
    %804 = vmatprep.subr.mxu0 0.0
    %805 = vmatpush1.msra.mxu0 %v782
    %806 = vmatprep.subr.mxu0 0.0
    %807 = vmatpush1.msra.mxu0 %v783
    %808 = vmatprep.subr.mxu0 0.0
    %809 = vmatpush1.msra.mxu0 %v784
    %810 = vmatprep.subr.mxu0 0.0
    %811 = vmatpush1.msra.mxu0 %v785
    %812 = vmatprep.subr.mxu0 0.0
    %813 = vmatpush1.msra.mxu0 %v786
    %814 = vmatprep.subr.mxu0 0.0
    %815 = vmatpush1.msra.mxu0 %v787
    %816 = vmatprep.subr.mxu0 0.0
    %817 = vmatpush1.msra.mxu0 %v788
    %818 = vmatprep.subr.mxu0 0.0
    %819 = vmatpush1.msra.mxu0 %v789
    %820 = vmatprep.subr.mxu0 0.0
    %821 = vmatpush1.msra.mxu0 %v790
    %822 = vmatprep.subr.mxu0 0.0
    %823 = vmatpush1.msra.mxu0 %v791
    %824 = vmatprep.subr.mxu0 0.0
    %825 = vmatpush1.msra.mxu0 0.0
    %826 = vmatprep.subr.mxu0 0.0
    %827 = vmatpush1.msra.mxu0 0.0
    %828 = vmatprep.subr.mxu0 0.0
    %829 = vmatpush1.msra.mxu0 0.0
    %830 = vmatprep.subr.mxu0 0.0
    %831 = vmatpush1.msra.mxu0 0.0
    %832 = vmatprep.subr.mxu0 0.0
    %833 = vmatpush1.msra.mxu0 0.0
    %834 = vmatprep.subr.mxu0 0.0
    %835 = vmatpush1.msra.mxu0 0.0
    %836 = vmatprep.subr.mxu0 0.0
    %837 = vmatpush1.msra.mxu0 0.0
    %838 = vmatprep.subr.mxu0 0.0
    %839 = vmatpush1.msra.mxu0 0.0
    %840 = vmatprep.subr.mxu0 0.0
    %841 = vmatpush1.msra.mxu0 0.0
    %842 = vmatprep.subr.mxu0 0.0
    %843 = vmatpush1.msra.mxu0 0.0
    %844 = vmatprep.subr.mxu0 0.0
    %845 = vmatpush1.msra.mxu0 0.0
    %846 = vmatprep.subr.mxu0 0.0
    %847 = vmatpush1.msra.mxu0 0.0
    %848 = vmatprep.subr.mxu0 0.0
    %849 = vmatpush1.msra.mxu0 0.0
    %850 = vmatprep.subr.mxu0 0.0
    %851 = vmatpush1.msra.mxu0 0.0
    %852 = vmatprep.subr.mxu0 0.0
    %853 = vmatpush1.msra.mxu0 0.0
    %854 = vmatprep.subr.mxu0 0.0
    %855 = vmatpush1.msra.mxu0 0.0
    %856 = vmatprep.mubr.f32.mxu0 0.0
    %857 = vmatmul.mubr.f32.gmra.mrb[0].mxu0 %v775
    %v858 = vpop.f32.mrb[0].mxu0
    %v859 = vadd.f32 0.0, %v858
    %v860 = vpop.f32.mrb[0].mxu0
    %861 = vdwg.mxu0
    %v862 = vadd.f32 %v774, %v859
    %v863 = vtanh.pop %v862
    %864 = vst.msk [vmem:[#allocation3] sm:$0x1] %vm229, %v863
    %v865 = vld [vmem:[#allocation3] sm:$0x3]
    %v866 = vld [vmem:[#allocation7] sm:$0xff]
    %v867 = vld [vmem:[#allocation7 + $0x8] sm:$0xff]
    %v868 = vld [vmem:[#allocation7 + $0x10] sm:$0xff]
    %v869 = vld [vmem:[#allocation7 + $0x18] sm:$0xff]
    %v870 = vld [vmem:[#allocation7 + $0x20] sm:$0xff]
    %v871 = vld [vmem:[#allocation7 + $0x28] sm:$0xff]
    %v872 = vld [vmem:[#allocation7 + $0x30] sm:$0xff]
    %v873 = vld [vmem:[#allocation7 + $0x38] sm:$0xff]
    %v874 = vld [vmem:[#allocation7 + $0x40] sm:$0xff]
    %v875 = vld [vmem:[#allocation7 + $0x48] sm:$0xff]
    %v876 = vld [vmem:[#allocation7 + $0x50] sm:$0xff]
    %v877 = vld [vmem:[#allocation7 + $0x58] sm:$0xff]
    %v878 = vld [vmem:[#allocation7 + $0x60] sm:$0xff]
    %v879 = vld [vmem:[#allocation7 + $0x68] sm:$0xff]
    %v880 = vld [vmem:[#allocation7 + $0x70] sm:$0xff]
    %v881 = vld [vmem:[#allocation7 + $0x78] sm:$0xff]
    %v882 = vld [vmem:[#allocation7 + $0x80] sm:$0xff]
    %v883 = vld [vmem:[#allocation7 + $0x88] sm:$0xff]
    %v884 = vld [vmem:[#allocation7 + $0x90] sm:$0xff]
    %v885 = vld [vmem:[#allocation7 + $0x98] sm:$0xff]
    %v886 = vld [vmem:[#allocation7 + $0xa0] sm:$0xff]
    %v887 = vld [vmem:[#allocation7 + $0xa8] sm:$0xff]
    %v888 = vld [vmem:[#allocation7 + $0xb0] sm:$0xff]
    %v889 = vld [vmem:[#allocation7 + $0xb8] sm:$0xff]
    %v890 = vld [vmem:[#allocation7 + $0xc0] sm:$0xff]
    %v891 = vld [vmem:[#allocation7 + $0xc8] sm:$0xff]
    %v892 = vld [vmem:[#allocation7 + $0xd0] sm:$0xff]
    %v893 = vld [vmem:[#allocation7 + $0xd8] sm:$0xff]
    %v894 = vld [vmem:[#allocation7 + $0xe0] sm:$0xff]
    %v895 = vld [vmem:[#allocation7 + $0xe8] sm:$0xff]
    %v896 = vld [vmem:[#allocation7 + $0xf0] sm:$0xff]
    %v897 = vld [vmem:[#allocation7 + $0xf8] sm:$0xff]
    %v899 = vlaneseq
    %v900 = vshrl.u32 %v899, 7
    %v901 = vsub.s32 0, %v900
    %v902 = vrot.slane %v865, %v901
    %v903 = vlaneseq
    %v904 = vshrl.u32 %v903, 7
    %v905 = vsub.s32 1, %v904
    %v906 = vrot.slane %v865, %v905
    %909 = vmatprep.subr.mxu0 0.0
    %910 = vmatpush1.msra.mxu0 %v866
    %911 = vmatprep.subr.mxu0 0.0
    %912 = vmatpush1.msra.mxu0 %v867
    %913 = vmatprep.subr.mxu0 0.0
    %914 = vmatpush1.msra.mxu0 %v868
    %915 = vmatprep.subr.mxu0 0.0
    %916 = vmatpush1.msra.mxu0 %v869
    %917 = vmatprep.subr.mxu0 0.0
    %918 = vmatpush1.msra.mxu0 %v870
    %919 = vmatprep.subr.mxu0 0.0
    %920 = vmatpush1.msra.mxu0 %v871
    %921 = vmatprep.subr.mxu0 0.0
    %922 = vmatpush1.msra.mxu0 %v872
    %923 = vmatprep.subr.mxu0 0.0
    %924 = vmatpush1.msra.mxu0 %v873
    %925 = vmatprep.subr.mxu0 0.0
    %926 = vmatpush1.msra.mxu0 %v874
    %927 = vmatprep.subr.mxu0 0.0
    %928 = vmatpush1.msra.mxu0 %v875
    %929 = vmatprep.subr.mxu0 0.0
    %930 = vmatpush1.msra.mxu0 %v876
    %931 = vmatprep.subr.mxu0 0.0
    %932 = vmatpush1.msra.mxu0 %v877
    %933 = vmatprep.subr.mxu0 0.0
    %934 = vmatpush1.msra.mxu0 %v878
    %935 = vmatprep.subr.mxu0 0.0
    %936 = vmatpush1.msra.mxu0 %v879
    %937 = vmatprep.subr.mxu0 0.0
    %938 = vmatpush1.msra.mxu0 %v880
    %939 = vmatprep.subr.mxu0 0.0
    %940 = vmatpush1.msra.mxu0 %v881
    %941 = vmatprep.subr.mxu0 0.0
    %942 = vmatpush1.msra.mxu0 %v882
    %943 = vmatprep.subr.mxu0 0.0
    %944 = vmatpush1.msra.mxu0 %v883
    %945 = vmatprep.subr.mxu0 0.0
    %946 = vmatpush1.msra.mxu0 %v884
    %947 = vmatprep.subr.mxu0 0.0
    %948 = vmatpush1.msra.mxu0 %v885
    %949 = vmatprep.subr.mxu0 0.0
    %950 = vmatpush1.msra.mxu0 %v886
    %951 = vmatprep.subr.mxu0 0.0
    %952 = vmatpush1.msra.mxu0 %v887
    %953 = vmatprep.subr.mxu0 0.0
    %954 = vmatpush1.msra.mxu0 %v888
    %955 = vmatprep.subr.mxu0 0.0
    %956 = vmatpush1.msra.mxu0 %v889
    %957 = vmatprep.subr.mxu0 0.0
    %958 = vmatpush1.msra.mxu0 %v890
    %959 = vmatprep.subr.mxu0 0.0
    %960 = vmatpush1.msra.mxu0 %v891
    %961 = vmatprep.subr.mxu0 0.0
    %962 = vmatpush1.msra.mxu0 %v892
    %963 = vmatprep.subr.mxu0 0.0
    %964 = vmatpush1.msra.mxu0 %v893
    %965 = vmatprep.subr.mxu0 0.0
    %966 = vmatpush1.msra.mxu0 %v894
    %967 = vmatprep.subr.mxu0 0.0
    %968 = vmatpush1.msra.mxu0 %v895
    %969 = vmatprep.subr.mxu0 0.0
    %970 = vmatpush1.msra.mxu0 %v896
    %971 = vmatprep.subr.mxu0 0.0
    %972 = vmatpush1.msra.mxu0 %v897
    %973 = vmatprep.mubr.f32.mxu0 %v906
    %974 = vmatmul.mubr.f32.gmra.mrb[0].mxu0 %v902
    %v975 = vpop.f32.mrb[0].mxu0
    %v976 = vadd.f32 0.0, %v975
    %v977 = vpop.f32.mrb[0].mxu0
    %978 = vdwg.mxu0
    %v979 = vtanh.pop %v976
    %980 = vst.msk [vmem:[#allocation3 + $0x1] sm:$0x1] %vm229, %v979
    %v981 = vld [vmem:[#allocation3] sm:$0x3]
    %s982 = scalar_lea.vmem [#allocation9], 3
    %983 = vst.msk [vmem:[%s982] ss:$8 sm:$0x3] %vm349, %v981
    %984 = vst.msk [vmem:[%s982] ss:$8 sm:$0x0] %vm349, %v981
    %v985 = vld [vmem:[#allocation2 + $0x4] sm:$0x1]
    %v986 = vld [vmem:[#allocation3] sm:$0x1]
    %v987 = vld [vmem:[#allocation4] sm:$0xff]
    %v988 = vld [vmem:[#allocation4 + $0x8] sm:$0xff]
    %v989 = vld [vmem:[#allocation4 + $0x10] sm:$0xff]
    %v990 = vld [vmem:[#allocation4 + $0x18] sm:$0xff]
    %v991 = vld [vmem:[#allocation4 + $0x20] sm:$0xff]
    %v992 = vld [vmem:[#allocation4 + $0x28] sm:$0xff]
    %v993 = vld [vmem:[#allocation4 + $0x30] sm:$0xff]
    %v994 = vld [vmem:[#allocation4 + $0x38] sm:$0xff]
    %v995 = vld [vmem:[#allocation4 + $0x40] sm:$0xff]
    %v996 = vld [vmem:[#allocation4 + $0x48] sm:$0xff]
    %v997 = vld [vmem:[#allocation4 + $0x50] sm:$0xff]
    %v998 = vld [vmem:[#allocation4 + $0x58] sm:$0xff]
    %v999 = vld [vmem:[#allocation4 + $0x60] sm:$0xff]
    %v1000 = vld [vmem:[#allocation4 + $0x68] sm:$0xff]
    %v1001 = vld [vmem:[#allocation4 + $0x70] sm:$0xff]
    %v1002 = vld [vmem:[#allocation4 + $0x78] sm:$0xff]
    %1003 = vmatprep.subr.mxu0 0.0
    %1004 = vmatpush1.msra.mxu0 %v987
    %1005 = vmatprep.subr.mxu0 0.0
    %1006 = vmatpush1.msra.mxu0 %v988
    %1007 = vmatprep.subr.mxu0 0.0
    %1008 = vmatpush1.msra.mxu0 %v989
    %1009 = vmatprep.subr.mxu0 0.0
    %1010 = vmatpush1.msra.mxu0 %v990
    %1011 = vmatprep.subr.mxu0 0.0
    %1012 = vmatpush1.msra.mxu0 %v991
    %1013 = vmatprep.subr.mxu0 0.0
    %1014 = vmatpush1.msra.mxu0 %v992
    %1015 = vmatprep.subr.mxu0 0.0
    %1016 = vmatpush1.msra.mxu0 %v993
    %1017 = vmatprep.subr.mxu0 0.0
    %1018 = vmatpush1.msra.mxu0 %v994
    %1019 = vmatprep.subr.mxu0 0.0
    %1020 = vmatpush1.msra.mxu0 %v995
    %1021 = vmatprep.subr.mxu0 0.0
    %1022 = vmatpush1.msra.mxu0 %v996
    %1023 = vmatprep.subr.mxu0 0.0
    %1024 = vmatpush1.msra.mxu0 %v997
    %1025 = vmatprep.subr.mxu0 0.0
    %1026 = vmatpush1.msra.mxu0 %v998
    %1027 = vmatprep.subr.mxu0 0.0
    %1028 = vmatpush1.msra.mxu0 %v999
    %1029 = vmatprep.subr.mxu0 0.0
    %1030 = vmatpush1.msra.mxu0 %v1000
    %1031 = vmatprep.subr.mxu0 0.0
    %1032 = vmatpush1.msra.mxu0 %v1001
    %1033 = vmatprep.subr.mxu0 0.0
    %1034 = vmatpush1.msra.mxu0 %v1002
    %1035 = vmatprep.subr.mxu0 0.0
    %1036 = vmatpush1.msra.mxu0 0.0
    %1037 = vmatprep.subr.mxu0 0.0
    %1038 = vmatpush1.msra.mxu0 0.0
    %1039 = vmatprep.subr.mxu0 0.0
    %1040 = vmatpush1.msra.mxu0 0.0
    %1041 = vmatprep.subr.mxu0 0.0
    %1042 = vmatpush1.msra.mxu0 0.0
    %1043 = vmatprep.subr.mxu0 0.0
    %1044 = vmatpush1.msra.mxu0 0.0
    %1045 = vmatprep.subr.mxu0 0.0
    %1046 = vmatpush1.msra.mxu0 0.0
    %1047 = vmatprep.subr.mxu0 0.0
    %1048 = vmatpush1.msra.mxu0 0.0
    %1049 = vmatprep.subr.mxu0 0.0
    %1050 = vmatpush1.msra.mxu0 0.0
    %1051 = vmatprep.subr.mxu0 0.0
    %1052 = vmatpush1.msra.mxu0 0.0
    %1053 = vmatprep.subr.mxu0 0.0
    %1054 = vmatpush1.msra.mxu0 0.0
    %1055 = vmatprep.subr.mxu0 0.0
    %1056 = vmatpush1.msra.mxu0 0.0
    %1057 = vmatprep.subr.mxu0 0.0
    %1058 = vmatpush1.msra.mxu0 0.0
    %1059 = vmatprep.subr.mxu0 0.0
    %1060 = vmatpush1.msra.mxu0 0.0
    %1061 = vmatprep.subr.mxu0 0.0
    %1062 = vmatpush1.msra.mxu0 0.0
    %1063 = vmatprep.subr.mxu0 0.0
    %1064 = vmatpush1.msra.mxu0 0.0
    %1065 = vmatprep.subr.mxu0 0.0
    %1066 = vmatpush1.msra.mxu0 0.0
    %1067 = vmatprep.mubr.f32.mxu0 0.0
    %1068 = vmatmul.mubr.f32.gmra.mrb[0].mxu0 %v986
    %v1069 = vpop.f32.mrb[0].mxu0
    %v1070 = vadd.f32 0.0, %v1069
    %v1071 = vpop.f32.mrb[0].mxu0
    %1072 = vdwg.mxu0
    %v1073 = vadd.f32 %v985, %v1070
    %v1074 = vtanh.pop %v1073
    %1075 = vst.msk [vmem:[#allocation3] sm:$0x1] %vm229, %v1074
    %v1076 = vld [vmem:[#allocation3] sm:$0x3]
    %v1077 = vld [vmem:[#allocation7] sm:$0xff]
    %v1078 = vld [vmem:[#allocation7 + $0x8] sm:$0xff]
    %v1079 = vld [vmem:[#allocation7 + $0x10] sm:$0xff]
    %v1080 = vld [vmem:[#allocation7 + $0x18] sm:$0xff]
    %v1081 = vld [vmem:[#allocation7 + $0x20] sm:$0xff]
    %v1082 = vld [vmem:[#allocation7 + $0x28] sm:$0xff]
    %v1083 = vld [vmem:[#allocation7 + $0x30] sm:$0xff]
    %v1084 = vld [vmem:[#allocation7 + $0x38] sm:$0xff]
    %v1085 = vld [vmem:[#allocation7 + $0x40] sm:$0xff]
    %v1086 = vld [vmem:[#allocation7 + $0x48] sm:$0xff]
    %v1087 = vld [vmem:[#allocation7 + $0x50] sm:$0xff]
    %v1088 = vld [vmem:[#allocation7 + $0x58] sm:$0xff]
    %v1089 = vld [vmem:[#allocation7 + $0x60] sm:$0xff]
    %v1090 = vld [vmem:[#allocation7 + $0x68] sm:$0xff]
    %v1091 = vld [vmem:[#allocation7 + $0x70] sm:$0xff]
    %v1092 = vld [vmem:[#allocation7 + $0x78] sm:$0xff]
    %v1093 = vld [vmem:[#allocation7 + $0x80] sm:$0xff]
    %v1094 = vld [vmem:[#allocation7 + $0x88] sm:$0xff]
    %v1095 = vld [vmem:[#allocation7 + $0x90] sm:$0xff]
    %v1096 = vld [vmem:[#allocation7 + $0x98] sm:$0xff]
    %v1097 = vld [vmem:[#allocation7 + $0xa0] sm:$0xff]
    %v1098 = vld [vmem:[#allocation7 + $0xa8] sm:$0xff]
    %v1099 = vld [vmem:[#allocation7 + $0xb0] sm:$0xff]
    %v1100 = vld [vmem:[#allocation7 + $0xb8] sm:$0xff]
    %v1101 = vld [vmem:[#allocation7 + $0xc0] sm:$0xff]
    %v1102 = vld [vmem:[#allocation7 + $0xc8] sm:$0xff]
    %v1103 = vld [vmem:[#allocation7 + $0xd0] sm:$0xff]
    %v1104 = vld [vmem:[#allocation7 + $0xd8] sm:$0xff]
    %v1105 = vld [vmem:[#allocation7 + $0xe0] sm:$0xff]
    %v1106 = vld [vmem:[#allocation7 + $0xe8] sm:$0xff]
    %v1107 = vld [vmem:[#allocation7 + $0xf0] sm:$0xff]
    %v1108 = vld [vmem:[#allocation7 + $0xf8] sm:$0xff]
    %v1110 = vlaneseq
    %v1111 = vshrl.u32 %v1110, 7
    %v1112 = vsub.s32 0, %v1111
    %v1113 = vrot.slane %v1076, %v1112
    %v1114 = vlaneseq
    %v1115 = vshrl.u32 %v1114, 7
    %v1116 = vsub.s32 1, %v1115
    %v1117 = vrot.slane %v1076, %v1116
    %1120 = vmatprep.subr.mxu0 0.0
    %1121 = vmatpush1.msra.mxu0 %v1077
    %1122 = vmatprep.subr.mxu0 0.0
    %1123 = vmatpush1.msra.mxu0 %v1078
    %1124 = vmatprep.subr.mxu0 0.0
    %1125 = vmatpush1.msra.mxu0 %v1079
    %1126 = vmatprep.subr.mxu0 0.0
    %1127 = vmatpush1.msra.mxu0 %v1080
    %1128 = vmatprep.subr.mxu0 0.0
    %1129 = vmatpush1.msra.mxu0 %v1081
    %1130 = vmatprep.subr.mxu0 0.0
    %1131 = vmatpush1.msra.mxu0 %v1082
    %1132 = vmatprep.subr.mxu0 0.0
    %1133 = vmatpush1.msra.mxu0 %v1083
    %1134 = vmatprep.subr.mxu0 0.0
    %1135 = vmatpush1.msra.mxu0 %v1084
    %1136 = vmatprep.subr.mxu0 0.0
    %1137 = vmatpush1.msra.mxu0 %v1085
    %1138 = vmatprep.subr.mxu0 0.0
    %1139 = vmatpush1.msra.mxu0 %v1086
    %1140 = vmatprep.subr.mxu0 0.0
    %1141 = vmatpush1.msra.mxu0 %v1087
    %1142 = vmatprep.subr.mxu0 0.0
    %1143 = vmatpush1.msra.mxu0 %v1088
    %1144 = vmatprep.subr.mxu0 0.0
    %1145 = vmatpush1.msra.mxu0 %v1089
    %1146 = vmatprep.subr.mxu0 0.0
    %1147 = vmatpush1.msra.mxu0 %v1090
    %1148 = vmatprep.subr.mxu0 0.0
    %1149 = vmatpush1.msra.mxu0 %v1091
    %1150 = vmatprep.subr.mxu0 0.0
    %1151 = vmatpush1.msra.mxu0 %v1092
    %1152 = vmatprep.subr.mxu0 0.0
    %1153 = vmatpush1.msra.mxu0 %v1093
    %1154 = vmatprep.subr.mxu0 0.0
    %1155 = vmatpush1.msra.mxu0 %v1094
    %1156 = vmatprep.subr.mxu0 0.0
    %1157 = vmatpush1.msra.mxu0 %v1095
    %1158 = vmatprep.subr.mxu0 0.0
    %1159 = vmatpush1.msra.mxu0 %v1096
    %1160 = vmatprep.subr.mxu0 0.0
    %1161 = vmatpush1.msra.mxu0 %v1097
    %1162 = vmatprep.subr.mxu0 0.0
    %1163 = vmatpush1.msra.mxu0 %v1098
    %1164 = vmatprep.subr.mxu0 0.0
    %1165 = vmatpush1.msra.mxu0 %v1099
    %1166 = vmatprep.subr.mxu0 0.0
    %1167 = vmatpush1.msra.mxu0 %v1100
    %1168 = vmatprep.subr.mxu0 0.0
    %1169 = vmatpush1.msra.mxu0 %v1101
    %1170 = vmatprep.subr.mxu0 0.0
    %1171 = vmatpush1.msra.mxu0 %v1102
    %1172 = vmatprep.subr.mxu0 0.0
    %1173 = vmatpush1.msra.mxu0 %v1103
    %1174 = vmatprep.subr.mxu0 0.0
    %1175 = vmatpush1.msra.mxu0 %v1104
    %1176 = vmatprep.subr.mxu0 0.0
    %1177 = vmatpush1.msra.mxu0 %v1105
    %1178 = vmatprep.subr.mxu0 0.0
    %1179 = vmatpush1.msra.mxu0 %v1106
    %1180 = vmatprep.subr.mxu0 0.0
    %1181 = vmatpush1.msra.mxu0 %v1107
    %1182 = vmatprep.subr.mxu0 0.0
    %1183 = vmatpush1.msra.mxu0 %v1108
    %1184 = vmatprep.mubr.f32.mxu0 %v1117
    %1185 = vmatmul.mubr.f32.gmra.mrb[0].mxu0 %v1113
    %v1186 = vpop.f32.mrb[0].mxu0
    %v1187 = vadd.f32 0.0, %v1186
    %v1188 = vpop.f32.mrb[0].mxu0
    %1189 = vdwg.mxu0
    %v1190 = vtanh.pop %v1187
    %1191 = vst.msk [vmem:[#allocation3 + $0x1] sm:$0x1] %vm229, %v1190
    %v1192 = vld [vmem:[#allocation3] sm:$0x3]
    %s1193 = scalar_lea.vmem [#allocation9], 4
    %1194 = vst.msk [vmem:[%s1193] ss:$8 sm:$0x3] %vm349, %v1192
    %1195 = vst.msk [vmem:[%s1193] ss:$8 sm:$0x0] %vm349, %v1192
    %v1196 = vld [vmem:[#allocation2 + $0x5] sm:$0x1]
    %v1197 = vld [vmem:[#allocation3] sm:$0x1]
    %v1198 = vld [vmem:[#allocation4] sm:$0xff]
    %v1199 = vld [vmem:[#allocation4 + $0x8] sm:$0xff]
    %v1200 = vld [vmem:[#allocation4 + $0x10] sm:$0xff]
    %v1201 = vld [vmem:[#allocation4 + $0x18] sm:$0xff]
    %v1202 = vld [vmem:[#allocation4 + $0x20] sm:$0xff]
    %v1203 = vld [vmem:[#allocation4 + $0x28] sm:$0xff]
    %v1204 = vld [vmem:[#allocation4 + $0x30] sm:$0xff]
    %v1205 = vld [vmem:[#allocation4 + $0x38] sm:$0xff]
    %v1206 = vld [vmem:[#allocation4 + $0x40] sm:$0xff]
    %v1207 = vld [vmem:[#allocation4 + $0x48] sm:$0xff]
    %v1208 = vld [vmem:[#allocation4 + $0x50] sm:$0xff]
    %v1209 = vld [vmem:[#allocation4 + $0x58] sm:$0xff]
    %v1210 = vld [vmem:[#allocation4 + $0x60] sm:$0xff]
    %v1211 = vld [vmem:[#allocation4 + $0x68] sm:$0xff]
    %v1212 = vld [vmem:[#allocation4 + $0x70] sm:$0xff]
    %v1213 = vld [vmem:[#allocation4 + $0x78] sm:$0xff]
    %1214 = vmatprep.subr.mxu0 0.0
    %1215 = vmatpush1.msra.mxu0 %v1198
    %1216 = vmatprep.subr.mxu0 0.0
    %1217 = vmatpush1.msra.mxu0 %v1199
    %1218 = vmatprep.subr.mxu0 0.0
    %1219 = vmatpush1.msra.mxu0 %v1200
    %1220 = vmatprep.subr.mxu0 0.0
    %1221 = vmatpush1.msra.mxu0 %v1201
    %1222 = vmatprep.subr.mxu0 0.0
    %1223 = vmatpush1.msra.mxu0 %v1202
    %1224 = vmatprep.subr.mxu0 0.0
    %1225 = vmatpush1.msra.mxu0 %v1203
    %1226 = vmatprep.subr.mxu0 0.0
    %1227 = vmatpush1.msra.mxu0 %v1204
    %1228 = vmatprep.subr.mxu0 0.0
    %1229 = vmatpush1.msra.mxu0 %v1205
    %1230 = vmatprep.subr.mxu0 0.0
    %1231 = vmatpush1.msra.mxu0 %v1206
    %1232 = vmatprep.subr.mxu0 0.0
    %1233 = vmatpush1.msra.mxu0 %v1207
    %1234 = vmatprep.subr.mxu0 0.0
    %1235 = vmatpush1.msra.mxu0 %v1208
    %1236 = vmatprep.subr.mxu0 0.0
    %1237 = vmatpush1.msra.mxu0 %v1209
    %1238 = vmatprep.subr.mxu0 0.0
    %1239 = vmatpush1.msra.mxu0 %v1210
    %1240 = vmatprep.subr.mxu0 0.0
    %1241 = vmatpush1.msra.mxu0 %v1211
    %1242 = vmatprep.subr.mxu0 0.0
    %1243 = vmatpush1.msra.mxu0 %v1212
    %1244 = vmatprep.subr.mxu0 0.0
    %1245 = vmatpush1.msra.mxu0 %v1213
    %1246 = vmatprep.subr.mxu0 0.0
    %1247 = vmatpush1.msra.mxu0 0.0
    %1248 = vmatprep.subr.mxu0 0.0
    %1249 = vmatpush1.msra.mxu0 0.0
    %1250 = vmatprep.subr.mxu0 0.0
    %1251 = vmatpush1.msra.mxu0 0.0
    %1252 = vmatprep.subr.mxu0 0.0
    %1253 = vmatpush1.msra.mxu0 0.0
    %1254 = vmatprep.subr.mxu0 0.0
    %1255 = vmatpush1.msra.mxu0 0.0
    %1256 = vmatprep.subr.mxu0 0.0
    %1257 = vmatpush1.msra.mxu0 0.0
    %1258 = vmatprep.subr.mxu0 0.0
    %1259 = vmatpush1.msra.mxu0 0.0
    %1260 = vmatprep.subr.mxu0 0.0
    %1261 = vmatpush1.msra.mxu0 0.0
    %1262 = vmatprep.subr.mxu0 0.0
    %1263 = vmatpush1.msra.mxu0 0.0
    %1264 = vmatprep.subr.mxu0 0.0
    %1265 = vmatpush1.msra.mxu0 0.0
    %1266 = vmatprep.subr.mxu0 0.0
    %1267 = vmatpush1.msra.mxu0 0.0
    %1268 = vmatprep.subr.mxu0 0.0
    %1269 = vmatpush1.msra.mxu0 0.0
    %1270 = vmatprep.subr.mxu0 0.0
    %1271 = vmatpush1.msra.mxu0 0.0
    %1272 = vmatprep.subr.mxu0 0.0
    %1273 = vmatpush1.msra.mxu0 0.0
    %1274 = vmatprep.subr.mxu0 0.0
    %1275 = vmatpush1.msra.mxu0 0.0
    %1276 = vmatprep.subr.mxu0 0.0
    %1277 = vmatpush1.msra.mxu0 0.0
    %1278 = vmatprep.mubr.f32.mxu0 0.0
    %1279 = vmatmul.mubr.f32.gmra.mrb[0].mxu0 %v1197
    %v1280 = vpop.f32.mrb[0].mxu0
    %v1281 = vadd.f32 0.0, %v1280
    %v1282 = vpop.f32.mrb[0].mxu0
    %1283 = vdwg.mxu0
    %v1284 = vadd.f32 %v1196, %v1281
    %v1285 = vtanh.pop %v1284
    %1286 = vst.msk [vmem:[#allocation3] sm:$0x1] %vm229, %v1285
    %v1287 = vld [vmem:[#allocation3] sm:$0x3]
    %v1288 = vld [vmem:[#allocation7] sm:$0xff]
    %v1289 = vld [vmem:[#allocation7 + $0x8] sm:$0xff]
    %v1290 = vld [vmem:[#allocation7 + $0x10] sm:$0xff]
    %v1291 = vld [vmem:[#allocation7 + $0x18] sm:$0xff]
    %v1292 = vld [vmem:[#allocation7 + $0x20] sm:$0xff]
    %v1293 = vld [vmem:[#allocation7 + $0x28] sm:$0xff]
    %v1294 = vld [vmem:[#allocation7 + $0x30] sm:$0xff]
    %v1295 = vld [vmem:[#allocation7 + $0x38] sm:$0xff]
    %v1296 = vld [vmem:[#allocation7 + $0x40] sm:$0xff]
    %v1297 = vld [vmem:[#allocation7 + $0x48] sm:$0xff]
    %v1298 = vld [vmem:[#allocation7 + $0x50] sm:$0xff]
    %v1299 = vld [vmem:[#allocation7 + $0x58] sm:$0xff]
    %v1300 = vld [vmem:[#allocation7 + $0x60] sm:$0xff]
    %v1301 = vld [vmem:[#allocation7 + $0x68] sm:$0xff]
    %v1302 = vld [vmem:[#allocation7 + $0x70] sm:$0xff]
    %v1303 = vld [vmem:[#allocation7 + $0x78] sm:$0xff]
    %v1304 = vld [vmem:[#allocation7 + $0x80] sm:$0xff]
    %v1305 = vld [vmem:[#allocation7 + $0x88] sm:$0xff]
    %v1306 = vld [vmem:[#allocation7 + $0x90] sm:$0xff]
    %v1307 = vld [vmem:[#allocation7 + $0x98] sm:$0xff]
    %v1308 = vld [vmem:[#allocation7 + $0xa0] sm:$0xff]
    %v1309 = vld [vmem:[#allocation7 + $0xa8] sm:$0xff]
    %v1310 = vld [vmem:[#allocation7 + $0xb0] sm:$0xff]
    %v1311 = vld [vmem:[#allocation7 + $0xb8] sm:$0xff]
    %v1312 = vld [vmem:[#allocation7 + $0xc0] sm:$0xff]
    %v1313 = vld [vmem:[#allocation7 + $0xc8] sm:$0xff]
    %v1314 = vld [vmem:[#allocation7 + $0xd0] sm:$0xff]
    %v1315 = vld [vmem:[#allocation7 + $0xd8] sm:$0xff]
    %v1316 = vld [vmem:[#allocation7 + $0xe0] sm:$0xff]
    %v1317 = vld [vmem:[#allocation7 + $0xe8] sm:$0xff]
    %v1318 = vld [vmem:[#allocation7 + $0xf0] sm:$0xff]
    %v1319 = vld [vmem:[#allocation7 + $0xf8] sm:$0xff]
    %v1321 = vlaneseq
    %v1322 = vshrl.u32 %v1321, 7
    %v1323 = vsub.s32 0, %v1322
    %v1324 = vrot.slane %v1287, %v1323
    %v1325 = vlaneseq
    %v1326 = vshrl.u32 %v1325, 7
    %v1327 = vsub.s32 1, %v1326
    %v1328 = vrot.slane %v1287, %v1327
    %1331 = vmatprep.subr.mxu0 0.0
    %1332 = vmatpush1.msra.mxu0 %v1288
    %1333 = vmatprep.subr.mxu0 0.0
    %1334 = vmatpush1.msra.mxu0 %v1289
    %1335 = vmatprep.subr.mxu0 0.0
    %1336 = vmatpush1.msra.mxu0 %v1290
    %1337 = vmatprep.subr.mxu0 0.0
    %1338 = vmatpush1.msra.mxu0 %v1291
    %1339 = vmatprep.subr.mxu0 0.0
    %1340 = vmatpush1.msra.mxu0 %v1292
    %1341 = vmatprep.subr.mxu0 0.0
    %1342 = vmatpush1.msra.mxu0 %v1293
    %1343 = vmatprep.subr.mxu0 0.0
    %1344 = vmatpush1.msra.mxu0 %v1294
    %1345 = vmatprep.subr.mxu0 0.0
    %1346 = vmatpush1.msra.mxu0 %v1295
    %1347 = vmatprep.subr.mxu0 0.0
    %1348 = vmatpush1.msra.mxu0 %v1296
    %1349 = vmatprep.subr.mxu0 0.0
    %1350 = vmatpush1.msra.mxu0 %v1297
    %1351 = vmatprep.subr.mxu0 0.0
    %1352 = vmatpush1.msra.mxu0 %v1298
    %1353 = vmatprep.subr.mxu0 0.0
    %1354 = vmatpush1.msra.mxu0 %v1299
    %1355 = vmatprep.subr.mxu0 0.0
    %1356 = vmatpush1.msra.mxu0 %v1300
    %1357 = vmatprep.subr.mxu0 0.0
    %1358 = vmatpush1.msra.mxu0 %v1301
    %1359 = vmatprep.subr.mxu0 0.0
    %1360 = vmatpush1.msra.mxu0 %v1302
    %1361 = vmatprep.subr.mxu0 0.0
    %1362 = vmatpush1.msra.mxu0 %v1303
    %1363 = vmatprep.subr.mxu0 0.0
    %1364 = vmatpush1.msra.mxu0 %v1304
    %1365 = vmatprep.subr.mxu0 0.0
    %1366 = vmatpush1.msra.mxu0 %v1305
    %1367 = vmatprep.subr.mxu0 0.0
    %1368 = vmatpush1.msra.mxu0 %v1306
    %1369 = vmatprep.subr.mxu0 0.0
    %1370 = vmatpush1.msra.mxu0 %v1307
    %1371 = vmatprep.subr.mxu0 0.0
    %1372 = vmatpush1.msra.mxu0 %v1308
    %1373 = vmatprep.subr.mxu0 0.0
    %1374 = vmatpush1.msra.mxu0 %v1309
    %1375 = vmatprep.subr.mxu0 0.0
    %1376 = vmatpush1.msra.mxu0 %v1310
    %1377 = vmatprep.subr.mxu0 0.0
    %1378 = vmatpush1.msra.mxu0 %v1311
    %1379 = vmatprep.subr.mxu0 0.0
    %1380 = vmatpush1.msra.mxu0 %v1312
    %1381 = vmatprep.subr.mxu0 0.0
    %1382 = vmatpush1.msra.mxu0 %v1313
    %1383 = vmatprep.subr.mxu0 0.0
    %1384 = vmatpush1.msra.mxu0 %v1314
    %1385 = vmatprep.subr.mxu0 0.0
    %1386 = vmatpush1.msra.mxu0 %v1315
    %1387 = vmatprep.subr.mxu0 0.0
    %1388 = vmatpush1.msra.mxu0 %v1316
    %1389 = vmatprep.subr.mxu0 0.0
    %1390 = vmatpush1.msra.mxu0 %v1317
    %1391 = vmatprep.subr.mxu0 0.0
    %1392 = vmatpush1.msra.mxu0 %v1318
    %1393 = vmatprep.subr.mxu0 0.0
    %1394 = vmatpush1.msra.mxu0 %v1319
    %1395 = vmatprep.mubr.f32.mxu0 %v1328
    %1396 = vmatmul.mubr.f32.gmra.mrb[0].mxu0 %v1324
    %v1397 = vpop.f32.mrb[0].mxu0
    %v1398 = vadd.f32 0.0, %v1397
    %v1399 = vpop.f32.mrb[0].mxu0
    %1400 = vdwg.mxu0
    %v1401 = vtanh.pop %v1398
    %1402 = vst.msk [vmem:[#allocation3 + $0x1] sm:$0x1] %vm229, %v1401
    %v1403 = vld [vmem:[#allocation3] sm:$0x3]
    %s1404 = scalar_lea.vmem [#allocation9], 5
    %1405 = vst.msk [vmem:[%s1404] ss:$8 sm:$0x3] %vm349, %v1403
    %1406 = vst.msk [vmem:[%s1404] ss:$8 sm:$0x0] %vm349, %v1403
    %v1407 = vld [vmem:[#allocation2 + $0x6] sm:$0x1]
    %v1408 = vld [vmem:[#allocation3] sm:$0x1]
    %v1409 = vld [vmem:[#allocation4] sm:$0xff]
    %v1410 = vld [vmem:[#allocation4 + $0x8] sm:$0xff]
    %v1411 = vld [vmem:[#allocation4 + $0x10] sm:$0xff]
    %v1412 = vld [vmem:[#allocation4 + $0x18] sm:$0xff]
    %v1413 = vld [vmem:[#allocation4 + $0x20] sm:$0xff]
    %v1414 = vld [vmem:[#allocation4 + $0x28] sm:$0xff]
    %v1415 = vld [vmem:[#allocation4 + $0x30] sm:$0xff]
    %v1416 = vld [vmem:[#allocation4 + $0x38] sm:$0xff]
    %v1417 = vld [vmem:[#allocation4 + $0x40] sm:$0xff]
    %v1418 = vld [vmem:[#allocation4 + $0x48] sm:$0xff]
    %v1419 = vld [vmem:[#allocation4 + $0x50] sm:$0xff]
    %v1420 = vld [vmem:[#allocation4 + $0x58] sm:$0xff]
    %v1421 = vld [vmem:[#allocation4 + $0x60] sm:$0xff]
    %v1422 = vld [vmem:[#allocation4 + $0x68] sm:$0xff]
    %v1423 = vld [vmem:[#allocation4 + $0x70] sm:$0xff]
    %v1424 = vld [vmem:[#allocation4 + $0x78] sm:$0xff]
    %1425 = vmatprep.subr.mxu0 0.0
    %1426 = vmatpush1.msra.mxu0 %v1409
    %1427 = vmatprep.subr.mxu0 0.0
    %1428 = vmatpush1.msra.mxu0 %v1410
    %1429 = vmatprep.subr.mxu0 0.0
    %1430 = vmatpush1.msra.mxu0 %v1411
    %1431 = vmatprep.subr.mxu0 0.0
    %1432 = vmatpush1.msra.mxu0 %v1412
    %1433 = vmatprep.subr.mxu0 0.0
    %1434 = vmatpush1.msra.mxu0 %v1413
    %1435 = vmatprep.subr.mxu0 0.0
    %1436 = vmatpush1.msra.mxu0 %v1414
    %1437 = vmatprep.subr.mxu0 0.0
    %1438 = vmatpush1.msra.mxu0 %v1415
    %1439 = vmatprep.subr.mxu0 0.0
    %1440 = vmatpush1.msra.mxu0 %v1416
    %1441 = vmatprep.subr.mxu0 0.0
    %1442 = vmatpush1.msra.mxu0 %v1417
    %1443 = vmatprep.subr.mxu0 0.0
    %1444 = vmatpush1.msra.mxu0 %v1418
    %1445 = vmatprep.subr.mxu0 0.0
    %1446 = vmatpush1.msra.mxu0 %v1419
    %1447 = vmatprep.subr.mxu0 0.0
    %1448 = vmatpush1.msra.mxu0 %v1420
    %1449 = vmatprep.subr.mxu0 0.0
    %1450 = vmatpush1.msra.mxu0 %v1421
    %1451 = vmatprep.subr.mxu0 0.0
    %1452 = vmatpush1.msra.mxu0 %v1422
    %1453 = vmatprep.subr.mxu0 0.0
    %1454 = vmatpush1.msra.mxu0 %v1423
    %1455 = vmatprep.subr.mxu0 0.0
    %1456 = vmatpush1.msra.mxu0 %v1424
    %1457 = vmatprep.subr.mxu0 0.0
    %1458 = vmatpush1.msra.mxu0 0.0
    %1459 = vmatprep.subr.mxu0 0.0
    %1460 = vmatpush1.msra.mxu0 0.0
    %1461 = vmatprep.subr.mxu0 0.0
    %1462 = vmatpush1.msra.mxu0 0.0
    %1463 = vmatprep.subr.mxu0 0.0
    %1464 = vmatpush1.msra.mxu0 0.0
    %1465 = vmatprep.subr.mxu0 0.0
    %1466 = vmatpush1.msra.mxu0 0.0
    %1467 = vmatprep.subr.mxu0 0.0
    %1468 = vmatpush1.msra.mxu0 0.0
    %1469 = vmatprep.subr.mxu0 0.0
    %1470 = vmatpush1.msra.mxu0 0.0
    %1471 = vmatprep.subr.mxu0 0.0
    %1472 = vmatpush1.msra.mxu0 0.0
    %1473 = vmatprep.subr.mxu0 0.0
    %1474 = vmatpush1.msra.mxu0 0.0
    %1475 = vmatprep.subr.mxu0 0.0
    %1476 = vmatpush1.msra.mxu0 0.0
    %1477 = vmatprep.subr.mxu0 0.0
    %1478 = vmatpush1.msra.mxu0 0.0
    %1479 = vmatprep.subr.mxu0 0.0
    %1480 = vmatpush1.msra.mxu0 0.0
    %1481 = vmatprep.subr.mxu0 0.0
    %1482 = vmatpush1.msra.mxu0 0.0
    %1483 = vmatprep.subr.mxu0 0.0
    %1484 = vmatpush1.msra.mxu0 0.0
    %1485 = vmatprep.subr.mxu0 0.0
    %1486 = vmatpush1.msra.mxu0 0.0
    %1487 = vmatprep.subr.mxu0 0.0
    %1488 = vmatpush1.msra.mxu0 0.0
    %1489 = vmatprep.mubr.f32.mxu0 0.0
    %1490 = vmatmul.mubr.f32.gmra.mrb[0].mxu0 %v1408
    %v1491 = vpop.f32.mrb[0].mxu0
    %v1492 = vadd.f32 0.0, %v1491
    %v1493 = vpop.f32.mrb[0].mxu0
    %1494 = vdwg.mxu0
    %v1495 = vadd.f32 %v1407, %v1492
    %v1496 = vtanh.pop %v1495
    %1497 = vst.msk [vmem:[#allocation3] sm:$0x1] %vm229, %v1496
    %v1498 = vld [vmem:[#allocation3] sm:$0x3]
    %v1499 = vld [vmem:[#allocation7] sm:$0xff]
    %v1500 = vld [vmem:[#allocation7 + $0x8] sm:$0xff]
    %v1501 = vld [vmem:[#allocation7 + $0x10] sm:$0xff]
    %v1502 = vld [vmem:[#allocation7 + $0x18] sm:$0xff]
    %v1503 = vld [vmem:[#allocation7 + $0x20] sm:$0xff]
    %v1504 = vld [vmem:[#allocation7 + $0x28] sm:$0xff]
    %v1505 = vld [vmem:[#allocation7 + $0x30] sm:$0xff]
    %v1506 = vld [vmem:[#allocation7 + $0x38] sm:$0xff]
    %v1507 = vld [vmem:[#allocation7 + $0x40] sm:$0xff]
    %v1508 = vld [vmem:[#allocation7 + $0x48] sm:$0xff]
    %v1509 = vld [vmem:[#allocation7 + $0x50] sm:$0xff]
    %v1510 = vld [vmem:[#allocation7 + $0x58] sm:$0xff]
    %v1511 = vld [vmem:[#allocation7 + $0x60] sm:$0xff]
    %v1512 = vld [vmem:[#allocation7 + $0x68] sm:$0xff]
    %v1513 = vld [vmem:[#allocation7 + $0x70] sm:$0xff]
    %v1514 = vld [vmem:[#allocation7 + $0x78] sm:$0xff]
    %v1515 = vld [vmem:[#allocation7 + $0x80] sm:$0xff]
    %v1516 = vld [vmem:[#allocation7 + $0x88] sm:$0xff]
    %v1517 = vld [vmem:[#allocation7 + $0x90] sm:$0xff]
    %v1518 = vld [vmem:[#allocation7 + $0x98] sm:$0xff]
    %v1519 = vld [vmem:[#allocation7 + $0xa0] sm:$0xff]
    %v1520 = vld [vmem:[#allocation7 + $0xa8] sm:$0xff]
    %v1521 = vld [vmem:[#allocation7 + $0xb0] sm:$0xff]
    %v1522 = vld [vmem:[#allocation7 + $0xb8] sm:$0xff]
    %v1523 = vld [vmem:[#allocation7 + $0xc0] sm:$0xff]
    %v1524 = vld [vmem:[#allocation7 + $0xc8] sm:$0xff]
    %v1525 = vld [vmem:[#allocation7 + $0xd0] sm:$0xff]
    %v1526 = vld [vmem:[#allocation7 + $0xd8] sm:$0xff]
    %v1527 = vld [vmem:[#allocation7 + $0xe0] sm:$0xff]
    %v1528 = vld [vmem:[#allocation7 + $0xe8] sm:$0xff]
    %v1529 = vld [vmem:[#allocation7 + $0xf0] sm:$0xff]
    %v1530 = vld [vmem:[#allocation7 + $0xf8] sm:$0xff]
    %v1532 = vlaneseq
    %v1533 = vshrl.u32 %v1532, 7
    %v1534 = vsub.s32 0, %v1533
    %v1535 = vrot.slane %v1498, %v1534
    %v1536 = vlaneseq
    %v1537 = vshrl.u32 %v1536, 7
    %v1538 = vsub.s32 1, %v1537
    %v1539 = vrot.slane %v1498, %v1538
    %1542 = vmatprep.subr.mxu0 0.0
    %1543 = vmatpush1.msra.mxu0 %v1499
    %1544 = vmatprep.subr.mxu0 0.0
    %1545 = vmatpush1.msra.mxu0 %v1500
    %1546 = vmatprep.subr.mxu0 0.0
    %1547 = vmatpush1.msra.mxu0 %v1501
    %1548 = vmatprep.subr.mxu0 0.0
    %1549 = vmatpush1.msra.mxu0 %v1502
    %1550 = vmatprep.subr.mxu0 0.0
    %1551 = vmatpush1.msra.mxu0 %v1503
    %1552 = vmatprep.subr.mxu0 0.0
    %1553 = vmatpush1.msra.mxu0 %v1504
    %1554 = vmatprep.subr.mxu0 0.0
    %1555 = vmatpush1.msra.mxu0 %v1505
    %1556 = vmatprep.subr.mxu0 0.0
    %1557 = vmatpush1.msra.mxu0 %v1506
    %1558 = vmatprep.subr.mxu0 0.0
    %1559 = vmatpush1.msra.mxu0 %v1507
    %1560 = vmatprep.subr.mxu0 0.0
    %1561 = vmatpush1.msra.mxu0 %v1508
    %1562 = vmatprep.subr.mxu0 0.0
    %1563 = vmatpush1.msra.mxu0 %v1509
    %1564 = vmatprep.subr.mxu0 0.0
    %1565 = vmatpush1.msra.mxu0 %v1510
    %1566 = vmatprep.subr.mxu0 0.0
    %1567 = vmatpush1.msra.mxu0 %v1511
    %1568 = vmatprep.subr.mxu0 0.0
    %1569 = vmatpush1.msra.mxu0 %v1512
    %1570 = vmatprep.subr.mxu0 0.0
    %1571 = vmatpush1.msra.mxu0 %v1513
    %1572 = vmatprep.subr.mxu0 0.0
    %1573 = vmatpush1.msra.mxu0 %v1514
    %1574 = vmatprep.subr.mxu0 0.0
    %1575 = vmatpush1.msra.mxu0 %v1515
    %1576 = vmatprep.subr.mxu0 0.0
    %1577 = vmatpush1.msra.mxu0 %v1516
    %1578 = vmatprep.subr.mxu0 0.0
    %1579 = vmatpush1.msra.mxu0 %v1517
    %1580 = vmatprep.subr.mxu0 0.0
    %1581 = vmatpush1.msra.mxu0 %v1518
    %1582 = vmatprep.subr.mxu0 0.0
    %1583 = vmatpush1.msra.mxu0 %v1519
    %1584 = vmatprep.subr.mxu0 0.0
    %1585 = vmatpush1.msra.mxu0 %v1520
    %1586 = vmatprep.subr.mxu0 0.0
    %1587 = vmatpush1.msra.mxu0 %v1521
    %1588 = vmatprep.subr.mxu0 0.0
    %1589 = vmatpush1.msra.mxu0 %v1522
    %1590 = vmatprep.subr.mxu0 0.0
    %1591 = vmatpush1.msra.mxu0 %v1523
    %1592 = vmatprep.subr.mxu0 0.0
    %1593 = vmatpush1.msra.mxu0 %v1524
    %1594 = vmatprep.subr.mxu0 0.0
    %1595 = vmatpush1.msra.mxu0 %v1525
    %1596 = vmatprep.subr.mxu0 0.0
    %1597 = vmatpush1.msra.mxu0 %v1526
    %1598 = vmatprep.subr.mxu0 0.0
    %1599 = vmatpush1.msra.mxu0 %v1527
    %1600 = vmatprep.subr.mxu0 0.0
    %1601 = vmatpush1.msra.mxu0 %v1528
    %1602 = vmatprep.subr.mxu0 0.0
    %1603 = vmatpush1.msra.mxu0 %v1529
    %1604 = vmatprep.subr.mxu0 0.0
    %1605 = vmatpush1.msra.mxu0 %v1530
    %1606 = vmatprep.mubr.f32.mxu0 %v1539
    %1607 = vmatmul.mubr.f32.gmra.mrb[0].mxu0 %v1535
    %v1608 = vpop.f32.mrb[0].mxu0
    %v1609 = vadd.f32 0.0, %v1608
    %v1610 = vpop.f32.mrb[0].mxu0
    %1611 = vdwg.mxu0
    %v1612 = vtanh.pop %v1609
    %1613 = vst.msk [vmem:[#allocation3 + $0x1] sm:$0x1] %vm229, %v1612
    %v1614 = vld [vmem:[#allocation3] sm:$0x3]
    %s1615 = scalar_lea.vmem [#allocation9], 6
    %1616 = vst.msk [vmem:[%s1615] ss:$8 sm:$0x3] %vm349, %v1614
    %1617 = vst.msk [vmem:[%s1615] ss:$8 sm:$0x0] %vm349, %v1614
    %v1618 = vld [vmem:[#allocation2 + $0x7] sm:$0x1]
    %v1619 = vld [vmem:[#allocation3] sm:$0x1]
    %v1620 = vld [vmem:[#allocation4] sm:$0xff]
    %v1621 = vld [vmem:[#allocation4 + $0x8] sm:$0xff]
    %v1622 = vld [vmem:[#allocation4 + $0x10] sm:$0xff]
    %v1623 = vld [vmem:[#allocation4 + $0x18] sm:$0xff]
    %v1624 = vld [vmem:[#allocation4 + $0x20] sm:$0xff]
    %v1625 = vld [vmem:[#allocation4 + $0x28] sm:$0xff]
    %v1626 = vld [vmem:[#allocation4 + $0x30] sm:$0xff]
    %v1627 = vld [vmem:[#allocation4 + $0x38] sm:$0xff]
    %v1628 = vld [vmem:[#allocation4 + $0x40] sm:$0xff]
    %v1629 = vld [vmem:[#allocation4 + $0x48] sm:$0xff]
    %v1630 = vld [vmem:[#allocation4 + $0x50] sm:$0xff]
    %v1631 = vld [vmem:[#allocation4 + $0x58] sm:$0xff]
    %v1632 = vld [vmem:[#allocation4 + $0x60] sm:$0xff]
    %v1633 = vld [vmem:[#allocation4 + $0x68] sm:$0xff]
    %v1634 = vld [vmem:[#allocation4 + $0x70] sm:$0xff]
    %v1635 = vld [vmem:[#allocation4 + $0x78] sm:$0xff]
    %1636 = vmatprep.subr.mxu0 0.0
    %1637 = vmatpush1.msra.mxu0 %v1620
    %1638 = vmatprep.subr.mxu0 0.0
    %1639 = vmatpush1.msra.mxu0 %v1621
    %1640 = vmatprep.subr.mxu0 0.0
    %1641 = vmatpush1.msra.mxu0 %v1622
    %1642 = vmatprep.subr.mxu0 0.0
    %1643 = vmatpush1.msra.mxu0 %v1623
    %1644 = vmatprep.subr.mxu0 0.0
    %1645 = vmatpush1.msra.mxu0 %v1624
    %1646 = vmatprep.subr.mxu0 0.0
    %1647 = vmatpush1.msra.mxu0 %v1625
    %1648 = vmatprep.subr.mxu0 0.0
    %1649 = vmatpush1.msra.mxu0 %v1626
    %1650 = vmatprep.subr.mxu0 0.0
    %1651 = vmatpush1.msra.mxu0 %v1627
    %1652 = vmatprep.subr.mxu0 0.0
    %1653 = vmatpush1.msra.mxu0 %v1628
    %1654 = vmatprep.subr.mxu0 0.0
    %1655 = vmatpush1.msra.mxu0 %v1629
    %1656 = vmatprep.subr.mxu0 0.0
    %1657 = vmatpush1.msra.mxu0 %v1630
    %1658 = vmatprep.subr.mxu0 0.0
    %1659 = vmatpush1.msra.mxu0 %v1631
    %1660 = vmatprep.subr.mxu0 0.0
    %1661 = vmatpush1.msra.mxu0 %v1632
    %1662 = vmatprep.subr.mxu0 0.0
    %1663 = vmatpush1.msra.mxu0 %v1633
    %1664 = vmatprep.subr.mxu0 0.0
    %1665 = vmatpush1.msra.mxu0 %v1634
    %1666 = vmatprep.subr.mxu0 0.0
    %1667 = vmatpush1.msra.mxu0 %v1635
    %1668 = vmatprep.subr.mxu0 0.0
    %1669 = vmatpush1.msra.mxu0 0.0
    %1670 = vmatprep.subr.mxu0 0.0
    %1671 = vmatpush1.msra.mxu0 0.0
    %1672 = vmatprep.subr.mxu0 0.0
    %1673 = vmatpush1.msra.mxu0 0.0
    %1674 = vmatprep.subr.mxu0 0.0
    %1675 = vmatpush1.msra.mxu0 0.0
    %1676 = vmatprep.subr.mxu0 0.0
    %1677 = vmatpush1.msra.mxu0 0.0
    %1678 = vmatprep.subr.mxu0 0.0
    %1679 = vmatpush1.msra.mxu0 0.0
    %1680 = vmatprep.subr.mxu0 0.0
    %1681 = vmatpush1.msra.mxu0 0.0
    %1682 = vmatprep.subr.mxu0 0.0
    %1683 = vmatpush1.msra.mxu0 0.0
    %1684 = vmatprep.subr.mxu0 0.0
    %1685 = vmatpush1.msra.mxu0 0.0
    %1686 = vmatprep.subr.mxu0 0.0
    %1687 = vmatpush1.msra.mxu0 0.0
    %1688 = vmatprep.subr.mxu0 0.0
    %1689 = vmatpush1.msra.mxu0 0.0
    %1690 = vmatprep.subr.mxu0 0.0
    %1691 = vmatpush1.msra.mxu0 0.0
    %1692 = vmatprep.subr.mxu0 0.0
    %1693 = vmatpush1.msra.mxu0 0.0
    %1694 = vmatprep.subr.mxu0 0.0
    %1695 = vmatpush1.msra.mxu0 0.0
    %1696 = vmatprep.subr.mxu0 0.0
    %1697 = vmatpush1.msra.mxu0 0.0
    %1698 = vmatprep.subr.mxu0 0.0
    %1699 = vmatpush1.msra.mxu0 0.0
    %1700 = vmatprep.mubr.f32.mxu0 0.0
    %1701 = vmatmul.mubr.f32.gmra.mrb[0].mxu0 %v1619
    %v1702 = vpop.f32.mrb[0].mxu0
    %v1703 = vadd.f32 0.0, %v1702
    %v1704 = vpop.f32.mrb[0].mxu0
    %1705 = vdwg.mxu0
    %v1706 = vadd.f32 %v1618, %v1703
    %v1707 = vtanh.pop %v1706
    %1708 = vst.msk [vmem:[#allocation3] sm:$0x1] %vm229, %v1707
    %v1709 = vld [vmem:[#allocation3] sm:$0x3]
    %v1710 = vld [vmem:[#allocation7] sm:$0xff]
    %v1711 = vld [vmem:[#allocation7 + $0x8] sm:$0xff]
    %v1712 = vld [vmem:[#allocation7 + $0x10] sm:$0xff]
    %v1713 = vld [vmem:[#allocation7 + $0x18] sm:$0xff]
    %v1714 = vld [vmem:[#allocation7 + $0x20] sm:$0xff]
    %v1715 = vld [vmem:[#allocation7 + $0x28] sm:$0xff]
    %v1716 = vld [vmem:[#allocation7 + $0x30] sm:$0xff]
    %v1717 = vld [vmem:[#allocation7 + $0x38] sm:$0xff]
    %v1718 = vld [vmem:[#allocation7 + $0x40] sm:$0xff]
    %v1719 = vld [vmem:[#allocation7 + $0x48] sm:$0xff]
    %v1720 = vld [vmem:[#allocation7 + $0x50] sm:$0xff]
    %v1721 = vld [vmem:[#allocation7 + $0x58] sm:$0xff]
    %v1722 = vld [vmem:[#allocation7 + $0x60] sm:$0xff]
    %v1723 = vld [vmem:[#allocation7 + $0x68] sm:$0xff]
    %v1724 = vld [vmem:[#allocation7 + $0x70] sm:$0xff]
    %v1725 = vld [vmem:[#allocation7 + $0x78] sm:$0xff]
    %v1726 = vld [vmem:[#allocation7 + $0x80] sm:$0xff]
    %v1727 = vld [vmem:[#allocation7 + $0x88] sm:$0xff]
    %v1728 = vld [vmem:[#allocation7 + $0x90] sm:$0xff]
    %v1729 = vld [vmem:[#allocation7 + $0x98] sm:$0xff]
    %v1730 = vld [vmem:[#allocation7 + $0xa0] sm:$0xff]
    %v1731 = vld [vmem:[#allocation7 + $0xa8] sm:$0xff]
    %v1732 = vld [vmem:[#allocation7 + $0xb0] sm:$0xff]
    %v1733 = vld [vmem:[#allocation7 + $0xb8] sm:$0xff]
    %v1734 = vld [vmem:[#allocation7 + $0xc0] sm:$0xff]
    %v1735 = vld [vmem:[#allocation7 + $0xc8] sm:$0xff]
    %v1736 = vld [vmem:[#allocation7 + $0xd0] sm:$0xff]
    %v1737 = vld [vmem:[#allocation7 + $0xd8] sm:$0xff]
    %v1738 = vld [vmem:[#allocation7 + $0xe0] sm:$0xff]
    %v1739 = vld [vmem:[#allocation7 + $0xe8] sm:$0xff]
    %v1740 = vld [vmem:[#allocation7 + $0xf0] sm:$0xff]
    %v1741 = vld [vmem:[#allocation7 + $0xf8] sm:$0xff]
    %v1743 = vlaneseq
    %v1744 = vshrl.u32 %v1743, 7
    %v1745 = vsub.s32 0, %v1744
    %v1746 = vrot.slane %v1709, %v1745
    %v1747 = vlaneseq
    %v1748 = vshrl.u32 %v1747, 7
    %v1749 = vsub.s32 1, %v1748
    %v1750 = vrot.slane %v1709, %v1749
    %1753 = vmatprep.subr.mxu0 0.0
    %1754 = vmatpush1.msra.mxu0 %v1710
    %1755 = vmatprep.subr.mxu0 0.0
    %1756 = vmatpush1.msra.mxu0 %v1711
    %1757 = vmatprep.subr.mxu0 0.0
    %1758 = vmatpush1.msra.mxu0 %v1712
    %1759 = vmatprep.subr.mxu0 0.0
    %1760 = vmatpush1.msra.mxu0 %v1713
    %1761 = vmatprep.subr.mxu0 0.0
    %1762 = vmatpush1.msra.mxu0 %v1714
    %1763 = vmatprep.subr.mxu0 0.0
    %1764 = vmatpush1.msra.mxu0 %v1715
    %1765 = vmatprep.subr.mxu0 0.0
    %1766 = vmatpush1.msra.mxu0 %v1716
    %1767 = vmatprep.subr.mxu0 0.0
    %1768 = vmatpush1.msra.mxu0 %v1717
    %1769 = vmatprep.subr.mxu0 0.0
    %1770 = vmatpush1.msra.mxu0 %v1718
    %1771 = vmatprep.subr.mxu0 0.0
    %1772 = vmatpush1.msra.mxu0 %v1719
    %1773 = vmatprep.subr.mxu0 0.0
    %1774 = vmatpush1.msra.mxu0 %v1720
    %1775 = vmatprep.subr.mxu0 0.0
    %1776 = vmatpush1.msra.mxu0 %v1721
    %1777 = vmatprep.subr.mxu0 0.0
    %1778 = vmatpush1.msra.mxu0 %v1722
    %1779 = vmatprep.subr.mxu0 0.0
    %1780 = vmatpush1.msra.mxu0 %v1723
    %1781 = vmatprep.subr.mxu0 0.0
    %1782 = vmatpush1.msra.mxu0 %v1724
    %1783 = vmatprep.subr.mxu0 0.0
    %1784 = vmatpush1.msra.mxu0 %v1725
    %1785 = vmatprep.subr.mxu0 0.0
    %1786 = vmatpush1.msra.mxu0 %v1726
    %1787 = vmatprep.subr.mxu0 0.0
    %1788 = vmatpush1.msra.mxu0 %v1727
    %1789 = vmatprep.subr.mxu0 0.0
    %1790 = vmatpush1.msra.mxu0 %v1728
    %1791 = vmatprep.subr.mxu0 0.0
    %1792 = vmatpush1.msra.mxu0 %v1729
    %1793 = vmatprep.subr.mxu0 0.0
    %1794 = vmatpush1.msra.mxu0 %v1730
    %1795 = vmatprep.subr.mxu0 0.0
    %1796 = vmatpush1.msra.mxu0 %v1731
    %1797 = vmatprep.subr.mxu0 0.0
    %1798 = vmatpush1.msra.mxu0 %v1732
    %1799 = vmatprep.subr.mxu0 0.0
    %1800 = vmatpush1.msra.mxu0 %v1733
    %1801 = vmatprep.subr.mxu0 0.0
    %1802 = vmatpush1.msra.mxu0 %v1734
    %1803 = vmatprep.subr.mxu0 0.0
    %1804 = vmatpush1.msra.mxu0 %v1735
    %1805 = vmatprep.subr.mxu0 0.0
    %1806 = vmatpush1.msra.mxu0 %v1736
    %1807 = vmatprep.subr.mxu0 0.0
    %1808 = vmatpush1.msra.mxu0 %v1737
    %1809 = vmatprep.subr.mxu0 0.0
    %1810 = vmatpush1.msra.mxu0 %v1738
    %1811 = vmatprep.subr.mxu0 0.0
    %1812 = vmatpush1.msra.mxu0 %v1739
    %1813 = vmatprep.subr.mxu0 0.0
    %1814 = vmatpush1.msra.mxu0 %v1740
    %1815 = vmatprep.subr.mxu0 0.0
    %1816 = vmatpush1.msra.mxu0 %v1741
    %1817 = vmatprep.mubr.f32.mxu0 %v1750
    %1818 = vmatmul.mubr.f32.gmra.mrb[0].mxu0 %v1746
    %v1819 = vpop.f32.mrb[0].mxu0
    %v1820 = vadd.f32 0.0, %v1819
    %v1821 = vpop.f32.mrb[0].mxu0
    %1822 = vdwg.mxu0
    %v1823 = vtanh.pop %v1820
    %1824 = vst.msk [vmem:[#allocation3 + $0x1] sm:$0x1] %vm229, %v1823
    %v1825 = vld [vmem:[#allocation3] sm:$0x3]
    %s1826 = scalar_lea.vmem [#allocation9], 7
    %1827 = vst.msk [vmem:[%s1826] ss:$8 sm:$0x3] %vm349, %v1825
    %1828 = vst.msk [vmem:[%s1826] ss:$8 sm:$0x0] %vm349, %v1825
    // Predicated region
    $region30: #{tpu_custom_call.1} parent=1 // pred_check
      _
    $region31: #{tpu_custom_call.1} parent=1 // pred_check_branch
      %1830 = sbr.rel (0) target = $region33
    $region32: #{tpu_custom_call.1} parent=1 // pred_region
      %s1832 = ssub.s32 256, 256
      %1833 = vsyncadd [#allocation6], %s1832
      %s1835 = sshll.u32 [#allocation9], 4
      %s1836 = int_to_ptr.vmem [resolvable:$true] %s1835
      %1838 = dma.vmem_to_hbm [thread:$0]  %s1836, 256, %s4, [#allocation6]
    $region33: #{tpu_custom_call.1} parent=1 // pred_fallthru
      _
    // Predicated region
    $region34: #{tpu_custom_call.1} parent=1 // pred_check
      _
    $region35: #{tpu_custom_call.1} parent=1 // pred_check_branch
      %1840 = sbr.rel (0) target = $region37
    $region36: #{tpu_custom_call.1} parent=1 // pred_region
      %1841 = dma.done [#allocation6], 256
    $region37: #{tpu_custom_call.1} parent=1 // pred_fallthru
      _
    %1842 = vsyncpa [#allocation5], 1
    %1843 = vsyncpa [#allocation8], 1
    %1844 = vsyncpa [#allocation6], 1

</llo_original>
